<compile_context>
chip_gen: v6e
topology: v6e:2x2x1
jax: 0.10.0
libtpu: 0.0.40
codegen_flags: <defaults>
</compile_context>

<pallas_src>
import functools

import jax
import jax.numpy as jnp
from jax import lax
from jax.experimental import pallas as pl
from jax.experimental.pallas import tpu as pltpu


def _round_up(x, m):
    return ((x + m - 1) // m) * m


def _weight_offsets(input_dim, class_emb_dim, hidden_dim, output_dim):
    """Row offsets of the weight sections inside the packed weight slab.

    Each section starts on a multiple of 8 rows so in-kernel slices stay
    sublane-tile aligned.
    """
    o_w1i = 0
    o_w1j = o_w1i + _round_up(input_dim, 8)
    o_w1c = o_w1j + _round_up(input_dim, 8)
    o_w2 = o_w1c + _round_up(class_emb_dim, 8)
    o_w34 = o_w2 + _round_up(hidden_dim, 8)
    rows = o_w34 + _round_up(output_dim, 8)
    return o_w1i, o_w1j, o_w1c, o_w2, o_w34, rows


def _semantic_relation_kernel(
    n_obj, in_dim, cls_dim, hid_dim, out_dim, rel_dim, neg_slope, bn_eps,
    # inputs
    obj_ref, cls_ref, w_ref, v_ref,
    # outputs
    out_ref, enh_ref,
):
    """Single-program kernel over all P = N*N object pairs (pair p = i*N + j).

    obj_ref : [N, D]      object features
    cls_ref : [P, C]      classes_embedding flattened row-major over (i, j)
    w_ref   : [Rw, L]     packed weights (w1_i | w1_j | w1_cls | w2 | [w3 w4])
    v_ref   : [5, L]      packed vectors (b1, gamma, beta, b2, [b3 b4])
    out_ref : [P, O + R]  lane-packed (features_out | relation_cls logits)
    enh_ref : [N, O]      enhanced_object_feats
    """
    N, D, C, H, O, R = n_obj, in_dim, cls_dim, hid_dim, out_dim, rel_dim
    P = N * N
    f32 = jnp.float32

    o_w1i, o_w1j, o_w1c, o_w2, o_w34, _ = _weight_offsets(D, C, H, O)

    obj = obj_ref[...]                                   # [N, D]
    cls = cls_ref[...]                                   # [P, C]

    w1_i = w_ref[o_w1i:o_w1i + D, 0:H]                   # [D, H]
    w1_j = w_ref[o_w1j:o_w1j + D, 0:H]                   # [D, H]
    w1_c = w_ref[o_w1c:o_w1c + C, 0:H]                   # [C, H]
    w2 = w_ref[o_w2:o_w2 + H, 0:O]                       # [H, O]
    w34 = w_ref[o_w34:o_w34 + O, 0:1 + R]                # [O, 1+R]

    b1 = v_ref[0:1, 0:H]
    gamma = v_ref[1:2, 0:H]
    beta = v_ref[2:3, 0:H]
    b2 = v_ref[3:4, 0:O]
    b34 = v_ref[4:5, 0:1 + R]

    # ---- index masks from 2-D iota + compares (no vector int div/mod). -----
    # (P, N) layout: sublane = pair p, lane = object index k.
    p_pn = lax.broadcasted_iota(jnp.int32, (P, N), 0)
    k_pn = lax.broadcasted_iota(jnp.int32, (P, N), 1)
    # sel_i[p, k] = [p // N == k]
    sel_i = jnp.where((p_pn >= k_pn * N) & (p_pn < (k_pn + 1) * N), 1.0, 0.0)
    # sel_j[p, k] = [p % N == k]  <=>  (p - k) in {0, N, ..., (N-1)*N}
    d_pn = p_pn - k_pn
    hit = d_pn == 0
    for m in range(1, N):                                # trace-time unroll, cheap VPU ops
        hit = hit | (d_pn == m * N)
    sel_j = jnp.where(hit, 1.0, 0.0)

    # (N, P) layout: sublane = object index, lane = pair p.
    i_np = lax.broadcasted_iota(jnp.int32, (N, P), 0)
    p_np = lax.broadcasted_iota(jnp.int32, (N, P), 1)
    # seg[i, p] = [p // N == i]   (block-diagonal segment mask)
    seg = jnp.where((p_np >= i_np * N) & (p_np < (i_np + 1) * N), 1.0, 0.0)
    # sel_jt[k, p] = [p % N == k]
    d_np = p_np - i_np
    hit_t = d_np == 0
    for m in range(1, N):
        hit_t = hit_t | (d_np == m * N)
    sel_jt = jnp.where(hit_t, 1.0, 0.0)

    # ---- semantic_encoding: Linear -> LeakyReLU -> BatchNorm1d -> Dropout(0) -> Linear
    # First Linear without materializing the [P, 2D+C] pair concat:
    # h[p] = feat_{p//N} @ W1_i + feat_{p%N} @ W1_j + cls[p] @ W1_c + b1.
    hi = jnp.dot(obj, w1_i, preferred_element_type=f32)          # [N, H]
    hj = jnp.dot(obj, w1_j, preferred_element_type=f32)          # [N, H]
    hc = jnp.dot(cls, w1_c, preferred_element_type=f32)          # [P, H]
    h = (jnp.dot(sel_i, hi, preferred_element_type=f32)
         + jnp.dot(sel_j, hj, preferred_element_type=f32)
         + hc + b1)                                              # [P, H]

    h = jnp.where(h >= 0.0, h, neg_slope * h)                    # LeakyReLU(0.01)

    # BatchNorm1d, training-mode batch statistics (biased variance), one pass.
    # TODO(synk): running_mean/running_var buffer updates (training-side state)
    # are not modeled; this matches a fresh module's train-mode forward.
    mean = jnp.mean(h, axis=0, keepdims=True)
    mean_sq = jnp.mean(h * h, axis=0, keepdims=True)
    var = jnp.maximum(mean_sq - mean * mean, 0.0)
    h = gamma * (h - mean) * lax.rsqrt(var + bn_eps) + beta
    # Dropout(p=0.0) == identity.

    f = jnp.dot(h, w2, preferred_element_type=f32) + b2          # [P, O]

    # ---- fused confidence + relation heads (one matmul; column 0 = confidence).
    fr = jnp.dot(f, w34, preferred_element_type=f32) + b34       # [P, 1+R]
    logit_col = fr[:, 0:1]                                       # [P, 1]

    # Single lane-packed store: [features_out | relation logits].
    out_ref[...] = jnp.concatenate([f, fr[:, 1:1 + R]], axis=1)

    # ---- per-object softmax over N partners + weighted aggregation, vectorized.
    # Scatter the [P,1] logit column into an [N,N] matrix with one matmul:
    # lg[i, j] = logit_col[i*N + j]  (exact: a single 1-weighted product per entry).
    lg = jnp.dot(seg, logit_col * sel_j, preferred_element_type=f32)     # [N, N]
    lg = lg - jnp.max(lg, axis=1, keepdims=True)
    e = jnp.exp(lg)
    w = e / jnp.sum(e, axis=1, keepdims=True)                    # softmax over partners j

    # Block-diagonal weight matrix W[i, p] = w[i, p % N] * [p // N == i].
    w_full = jnp.dot(w, sel_jt, preferred_element_type=f32) * seg        # [N, P]
    enh_ref[...] = jnp.dot(w_full, f, preferred_element_type=f32)        # [N, O]


def init_params(key, input_dim, class_emb_dim, hidden_dim, output_dim, relation_dim):
    """Synthetic init mirroring the module: Kaiming-normal Linear weights
    (std = sqrt(2 / fan_in)), zero biases, BatchNorm gamma = 1, beta = 0.
    Weights stored as [in, out] for x @ W."""
    feat_dim = 2 * input_dim + class_emb_dim
    k1, k2, k3, k4 = jax.random.split(key, 4)

    def kaiming(k, fan_in, fan_out):
        return jax.random.normal(k, (fan_in, fan_out), jnp.float32) * jnp.sqrt(2.0 / fan_in)

    return dict(
        w1=kaiming(k1, feat_dim, hidden_dim),
        b1=jnp.zeros((1, hidden_dim), jnp.float32),
        gamma=jnp.ones((1, hidden_dim), jnp.float32),
        beta=jnp.zeros((1, hidden_dim), jnp.float32),
        w2=kaiming(k2, hidden_dim, output_dim),
        b2=jnp.zeros((1, output_dim), jnp.float32),
        w3=kaiming(k3, output_dim, 1),
        b3=jnp.zeros((1, 1), jnp.float32),
        w4=kaiming(k4, output_dim, relation_dim),
        b4=jnp.zeros((1, relation_dim), jnp.float32),
    )


def pack_params(params, input_dim, class_emb_dim, hidden_dim, output_dim, relation_dim):
    """Pack the 11 parameter arrays into 2 kernel operands (done once, off the hot path)."""
    D, C, H, O, R = input_dim, class_emb_dim, hidden_dim, output_dim, relation_dim
    o_w1i, o_w1j, o_w1c, o_w2, o_w34, rows = _weight_offsets(D, C, H, O)
    lanes = max(H, O, 1 + R)

    w_packed = jnp.zeros((rows, lanes), jnp.float32)
    w1 = params["w1"]
    w_packed = w_packed.at[o_w1i:o_w1i + D, 0:H].set(w1[0:D])
    w_packed = w_packed.at[o_w1j:o_w1j + D, 0:H].set(w1[D:2 * D])
    w_packed = w_packed.at[o_w1c:o_w1c + C, 0:H].set(w1[2 * D:2 * D + C])
    w_packed = w_packed.at[o_w2:o_w2 + H, 0:O].set(params["w2"])
    w_packed = w_packed.at[o_w34:o_w34 + O, 0:1].set(params["w3"])
    w_packed = w_packed.at[o_w34:o_w34 + O, 1:1 + R].set(params["w4"])

    v_packed = jnp.zeros((5, lanes), jnp.float32)
    v_packed = v_packed.at[0, 0:H].set(params["b1"].reshape(-1))
    v_packed = v_packed.at[1, 0:H].set(params["gamma"].reshape(-1))
    v_packed = v_packed.at[2, 0:H].set(params["beta"].reshape(-1))
    v_packed = v_packed.at[3, 0:O].set(params["b2"].reshape(-1))
    v_packed = v_packed.at[4, 0:1].set(params["b3"].reshape(-1))
    v_packed = v_packed.at[4, 1:1 + R].set(params["b4"].reshape(-1))
    return w_packed, v_packed


@functools.partial(jax.jit, static_argnames=("hidden_dim", "output_dim", "relation_dim"))
def semantic_relation_forward(object_feats, classes_embedding, w_packed, v_packed,
                              *, hidden_dim, output_dim, relation_dim):
    """Equivalent of SemanticRelation.forward with layers=1, dropout=0.

    Returns (features [N,N,O], enhanced_object_feats [N,O], relation_cls [N,N,R]).
    """
    N, D = object_feats.shape
    C = classes_embedding.shape[-1]
    H, O, R = hidden_dim, output_dim, relation_dim
    P = N * N

    cls_flat = classes_embedding.reshape(P, C)   # contiguous collapse of leading dims

    kernel = functools.partial(
        _semantic_relation_kernel, N, D, C, H, O, R, 0.01, 1e-5)

    flops = 2 * (2 * N * D * H          # hi, hj
                 + P * C * H            # hc
                 + 2 * P * N * H        # selector broadcasts of hi / hj
                 + P * H * O            # second encoder linear
                 + P * O * (1 + R)      # fused confidence + relation heads
                 + N * P * N            # logit scatter
                 + N * P * N            # block-diagonal weight build
                 + N * P * O)           # weighted aggregation
    transcendentals = P + 2 * H + N
    bytes_accessed = 4 * (N * D + P * C + int(w_packed.size) + int(v_packed.size)
                          + P * (O + R) + N * O)
    cost = pl.CostEstimate(flops=flops, transcendentals=transcendentals,
                           bytes_accessed=bytes_accessed)

    vmem = pl.BlockSpec(memory_space=pltpu.MemorySpace.VMEM)
    packed_out, enhanced = pl.pallas_call(
        kernel,
        out_shape=(
            jax.ShapeDtypeStruct((P, O + R), jnp.float32),
            jax.ShapeDtypeStruct((N, O), jnp.float32),
        ),
        in_specs=[vmem, vmem, vmem, vmem],
        out_specs=(vmem, vmem),
        cost_estimate=cost,
    )(object_feats, cls_flat, w_packed, v_packed)

    features = packed_out[:, 0:O].reshape(N, N, O)
    relation_cls = packed_out[:, O:O + R].reshape(N, N, R)
    return features, enhanced, relation_cls


def _reference_forward(object_feats, classes_embedding, params):
    """Pure-JAX reference mirroring the PyTorch forward (for verification)."""
    N, D = object_feats.shape
    C = classes_embedding.shape[-1]
    P = N * N
    fi = jnp.broadcast_to(object_feats[:, None, :], (N, N, D)).reshape(P, D)
    fj = jnp.broadcast_to(object_feats[None, :, :], (N, N, D)).reshape(P, D)
    cls = classes_embedding.reshape(P, C)
    x = jnp.concatenate([fi, fj, cls], axis=1)
    h = x @ params["w1"] + params["b1"]
    h = jnp.where(h >= 0.0, h, 0.01 * h)
    mean = jnp.mean(h, axis=0, keepdims=True)
    var = jnp.mean((h - mean) ** 2, axis=0, keepdims=True)
    h = params["gamma"] * (h - mean) / jnp.sqrt(var + 1e-5) + params["beta"]
    f = h @ params["w2"] + params["b2"]
    logits = (f @ params["w3"] + params["b3"]).reshape(N, N)
    w = jax.nn.softmax(logits, axis=1)
    enh = jnp.einsum("ij,ijo->io", w, f.reshape(N, N, -1))
    rel = f @ params["w4"] + params["b4"]
    return f.reshape(N, N, -1), enh, rel.reshape(N, N, -1)


if __name__ == "__main__":
    # Small shapes consistent with the module (layers=1, dropout_prob=0.0).
    N = 8            # number of objects
    input_dim = 16
    class_emb_dim = 8
    hidden_dim = 32
    output_dim = 16
    relation_dim = 8

    key = jax.random.PRNGKey(0)
    k_feat, k_cls, k_par = jax.random.split(key, 3)
    object_feats = jax.random.normal(k_feat, (N, input_dim), jnp.float32)
    classes_embedding = jax.random.normal(k_cls, (N, N, class_emb_dim), jnp.float32)

    params = init_params(k_par, input_dim, class_emb_dim, hidden_dim, output_dim, relation_dim)
    w_packed, v_packed = pack_params(params, input_dim, class_emb_dim,
                                     hidden_dim, output_dim, relation_dim)

    features, enhanced_object_feats, relation_cls = semantic_relation_forward(
        object_feats, classes_embedding, w_packed, v_packed,
        hidden_dim=hidden_dim, output_dim=output_dim, relation_dim=relation_dim)
    jax.block_until_ready((features, enhanced_object_feats, relation_cls))

    assert features.shape == (N, N, output_dim)
    assert enhanced_object_feats.shape == (N, output_dim)
    assert relation_cls.shape == (N, N, relation_dim)

    # Verify the vectorized scatter/softmax and fused heads against pure JAX.
    ref_feat, ref_enh, ref_rel = _reference_forward(object_feats, classes_embedding, params)
    assert bool(jnp.allclose(features, ref_feat, rtol=5e-2, atol=5e-2))
    assert bool(jnp.allclose(enhanced_object_feats, ref_enh, rtol=5e-2, atol=5e-2))
    assert bool(jnp.allclose(relation_cls, ref_rel, rtol=5e-2, atol=5e-2))

    print("KERNEL_OK")
</pallas_src>

<mosaic_0001>
module attributes {stable_mosaic.version = 11 : i64} {
  func.func @_semantic_relation_kernel(%arg0: memref<8x16xf32, #tpu.memory_space<vmem>>, %arg1: memref<64x8xf32, #tpu.memory_space<vmem>>, %arg2: memref<88x32xf32, #tpu.memory_space<vmem>>, %arg3: memref<5x32xf32, #tpu.memory_space<vmem>>, %arg4: memref<64x24xf32, #tpu.memory_space<vmem>>, %arg5: memref<8x16xf32, #tpu.memory_space<vmem>>) attributes {dimension_semantics = [], scalar_prefetch = 0 : i64, scratch_operands = 0 : i64, tpu.core_type = #tpu.core_type<tc>} {
    %c0 = arith.constant 0 : index
    %c0_0 = arith.constant 0 : index
    %0 = vector.load %arg0[%c0, %c0_0] : memref<8x16xf32, #tpu.memory_space<vmem>>, vector<8x16xf32>
    %c0_1 = arith.constant 0 : index
    %c0_2 = arith.constant 0 : index
    %1 = vector.load %arg1[%c0_1, %c0_2] : memref<64x8xf32, #tpu.memory_space<vmem>>, vector<64x8xf32>
    %c0_3 = arith.constant 0 : index
    %c0_4 = arith.constant 0 : index
    %2 = vector.load %arg2[%c0_3, %c0_4] : memref<88x32xf32, #tpu.memory_space<vmem>>, vector<16x32xf32>
    %c16 = arith.constant 16 : index
    %c0_5 = arith.constant 0 : index
    %3 = vector.load %arg2[%c16, %c0_5] : memref<88x32xf32, #tpu.memory_space<vmem>>, vector<16x32xf32>
    %c32 = arith.constant 32 : index
    %c0_6 = arith.constant 0 : index
    %4 = vector.load %arg2[%c32, %c0_6] : memref<88x32xf32, #tpu.memory_space<vmem>>, vector<8x32xf32>
    %c40 = arith.constant 40 : index
    %c0_7 = arith.constant 0 : index
    %5 = vector.load %arg2[%c40, %c0_7] : memref<88x32xf32, #tpu.memory_space<vmem>>, vector<32x16xf32>
    %c72 = arith.constant 72 : index
    %c0_8 = arith.constant 0 : index
    %6 = vector.load %arg2[%c72, %c0_8] : memref<88x32xf32, #tpu.memory_space<vmem>>, vector<16x9xf32>
    %c0_9 = arith.constant 0 : index
    %c0_10 = arith.constant 0 : index
    %7 = vector.load %arg3[%c0_9, %c0_10] : memref<5x32xf32, #tpu.memory_space<vmem>>, vector<1x32xf32>
    %c1 = arith.constant 1 : index
    %c0_11 = arith.constant 0 : index
    %8 = vector.load %arg3[%c1, %c0_11] : memref<5x32xf32, #tpu.memory_space<vmem>>, vector<1x32xf32>
    %c2 = arith.constant 2 : index
    %c0_12 = arith.constant 0 : index
    %9 = vector.load %arg3[%c2, %c0_12] : memref<5x32xf32, #tpu.memory_space<vmem>>, vector<1x32xf32>
    %c3 = arith.constant 3 : index
    %c0_13 = arith.constant 0 : index
    %10 = vector.load %arg3[%c3, %c0_13] : memref<5x32xf32, #tpu.memory_space<vmem>>, vector<1x16xf32>
    %c4 = arith.constant 4 : index
    %c0_14 = arith.constant 0 : index
    %11 = vector.load %arg3[%c4, %c0_14] : memref<5x32xf32, #tpu.memory_space<vmem>>, vector<1x9xf32>
    %12 = tpu.iota {dimensions = array<i32: 0>} : vector<64x8xi32>
    %13 = tpu.iota {dimensions = array<i32: 1>} : vector<64x8xi32>
    %c8_i32 = arith.constant 8 : i32
    %14 = vector.broadcast %c8_i32 : i32 to vector<64x8xi32>
    %15 = arith.muli %13, %14 : vector<64x8xi32>
    %16 = arith.cmpi sge, %12, %15 : vector<64x8xi32>
    %c1_i32 = arith.constant 1 : i32
    %17 = vector.broadcast %c1_i32 : i32 to vector<64x8xi32>
    %18 = arith.addi %13, %17 : vector<64x8xi32>
    %c8_i32_15 = arith.constant 8 : i32
    %19 = vector.broadcast %c8_i32_15 : i32 to vector<64x8xi32>
    %20 = arith.muli %18, %19 : vector<64x8xi32>
    %21 = arith.cmpi slt, %12, %20 : vector<64x8xi32>
    %22 = arith.andi %16, %21 : vector<64x8xi1>
    %cst = arith.constant 1.000000e+00 : f32
    %cst_16 = arith.constant 0.000000e+00 : f32
    %23 = vector.broadcast %cst : f32 to vector<64x8xf32>
    %24 = vector.broadcast %cst_16 : f32 to vector<64x8xf32>
    %25 = arith.select %22, %23, %24 : vector<64x8xi1>, vector<64x8xf32>
    %26 = arith.subi %12, %13 : vector<64x8xi32>
    %c0_i32 = arith.constant 0 : i32
    %27 = vector.broadcast %c0_i32 : i32 to vector<64x8xi32>
    %28 = arith.cmpi eq, %26, %27 : vector<64x8xi32>
    %c8_i32_17 = arith.constant 8 : i32
    %29 = vector.broadcast %c8_i32_17 : i32 to vector<64x8xi32>
    %30 = arith.cmpi eq, %26, %29 : vector<64x8xi32>
    %31 = arith.ori %28, %30 : vector<64x8xi1>
    %c16_i32 = arith.constant 16 : i32
    %32 = vector.broadcast %c16_i32 : i32 to vector<64x8xi32>
    %33 = arith.cmpi eq, %26, %32 : vector<64x8xi32>
    %34 = arith.ori %31, %33 : vector<64x8xi1>
    %c24_i32 = arith.constant 24 : i32
    %35 = vector.broadcast %c24_i32 : i32 to vector<64x8xi32>
    %36 = arith.cmpi eq, %26, %35 : vector<64x8xi32>
    %37 = arith.ori %34, %36 : vector<64x8xi1>
    %c32_i32 = arith.constant 32 : i32
    %38 = vector.broadcast %c32_i32 : i32 to vector<64x8xi32>
    %39 = arith.cmpi eq, %26, %38 : vector<64x8xi32>
    %40 = arith.ori %37, %39 : vector<64x8xi1>
    %c40_i32 = arith.constant 40 : i32
    %41 = vector.broadcast %c40_i32 : i32 to vector<64x8xi32>
    %42 = arith.cmpi eq, %26, %41 : vector<64x8xi32>
    %43 = arith.ori %40, %42 : vector<64x8xi1>
    %c48_i32 = arith.constant 48 : i32
    %44 = vector.broadcast %c48_i32 : i32 to vector<64x8xi32>
    %45 = arith.cmpi eq, %26, %44 : vector<64x8xi32>
    %46 = arith.ori %43, %45 : vector<64x8xi1>
    %c56_i32 = arith.constant 56 : i32
    %47 = vector.broadcast %c56_i32 : i32 to vector<64x8xi32>
    %48 = arith.cmpi eq, %26, %47 : vector<64x8xi32>
    %49 = arith.ori %46, %48 : vector<64x8xi1>
    %cst_18 = arith.constant 1.000000e+00 : f32
    %cst_19 = arith.constant 0.000000e+00 : f32
    %50 = vector.broadcast %cst_18 : f32 to vector<64x8xf32>
    %51 = vector.broadcast %cst_19 : f32 to vector<64x8xf32>
    %52 = arith.select %49, %50, %51 : vector<64x8xi1>, vector<64x8xf32>
    %53 = tpu.iota {dimensions = array<i32: 0>} : vector<8x64xi32>
    %54 = tpu.iota {dimensions = array<i32: 1>} : vector<8x64xi32>
    %c8_i32_20 = arith.constant 8 : i32
    %55 = vector.broadcast %c8_i32_20 : i32 to vector<8x64xi32>
    %56 = arith.muli %53, %55 : vector<8x64xi32>
    %57 = arith.cmpi sge, %54, %56 : vector<8x64xi32>
    %c1_i32_21 = arith.constant 1 : i32
    %58 = vector.broadcast %c1_i32_21 : i32 to vector<8x64xi32>
    %59 = arith.addi %53, %58 : vector<8x64xi32>
    %c8_i32_22 = arith.constant 8 : i32
    %60 = vector.broadcast %c8_i32_22 : i32 to vector<8x64xi32>
    %61 = arith.muli %59, %60 : vector<8x64xi32>
    %62 = arith.cmpi slt, %54, %61 : vector<8x64xi32>
    %63 = arith.andi %57, %62 : vector<8x64xi1>
    %cst_23 = arith.constant 1.000000e+00 : f32
    %cst_24 = arith.constant 0.000000e+00 : f32
    %64 = vector.broadcast %cst_23 : f32 to vector<8x64xf32>
    %65 = vector.broadcast %cst_24 : f32 to vector<8x64xf32>
    %66 = arith.select %63, %64, %65 : vector<8x64xi1>, vector<8x64xf32>
    %67 = arith.subi %54, %53 : vector<8x64xi32>
    %c0_i32_25 = arith.constant 0 : i32
    %68 = vector.broadcast %c0_i32_25 : i32 to vector<8x64xi32>
    %69 = arith.cmpi eq, %67, %68 : vector<8x64xi32>
    %c8_i32_26 = arith.constant 8 : i32
    %70 = vector.broadcast %c8_i32_26 : i32 to vector<8x64xi32>
    %71 = arith.cmpi eq, %67, %70 : vector<8x64xi32>
    %72 = arith.ori %69, %71 : vector<8x64xi1>
    %c16_i32_27 = arith.constant 16 : i32
    %73 = vector.broadcast %c16_i32_27 : i32 to vector<8x64xi32>
    %74 = arith.cmpi eq, %67, %73 : vector<8x64xi32>
    %75 = arith.ori %72, %74 : vector<8x64xi1>
    %c24_i32_28 = arith.constant 24 : i32
    %76 = vector.broadcast %c24_i32_28 : i32 to vector<8x64xi32>
    %77 = arith.cmpi eq, %67, %76 : vector<8x64xi32>
    %78 = arith.ori %75, %77 : vector<8x64xi1>
    %c32_i32_29 = arith.constant 32 : i32
    %79 = vector.broadcast %c32_i32_29 : i32 to vector<8x64xi32>
    %80 = arith.cmpi eq, %67, %79 : vector<8x64xi32>
    %81 = arith.ori %78, %80 : vector<8x64xi1>
    %c40_i32_30 = arith.constant 40 : i32
    %82 = vector.broadcast %c40_i32_30 : i32 to vector<8x64xi32>
    %83 = arith.cmpi eq, %67, %82 : vector<8x64xi32>
    %84 = arith.ori %81, %83 : vector<8x64xi1>
    %c48_i32_31 = arith.constant 48 : i32
    %85 = vector.broadcast %c48_i32_31 : i32 to vector<8x64xi32>
    %86 = arith.cmpi eq, %67, %85 : vector<8x64xi32>
    %87 = arith.ori %84, %86 : vector<8x64xi1>
    %c56_i32_32 = arith.constant 56 : i32
    %88 = vector.broadcast %c56_i32_32 : i32 to vector<8x64xi32>
    %89 = arith.cmpi eq, %67, %88 : vector<8x64xi32>
    %90 = arith.ori %87, %89 : vector<8x64xi1>
    %cst_33 = arith.constant 1.000000e+00 : f32
    %cst_34 = arith.constant 0.000000e+00 : f32
    %91 = vector.broadcast %cst_33 : f32 to vector<8x64xf32>
    %92 = vector.broadcast %cst_34 : f32 to vector<8x64xf32>
    %93 = arith.select %90, %91, %92 : vector<8x64xi1>, vector<8x64xf32>
    %cst_35 = arith.constant dense<0.000000e+00> : vector<8x32xf32>
    %94 = tpu.matmul %0, %2, %cst_35 {dimension_numbers = #tpu.dot_dimension_numbers<[1], [0], [0], [1], [0, 0, 1, 1], [], []>} : vector<8x16xf32>, vector<16x32xf32>, vector<8x32xf32> -> vector<8x32xf32>
    %cst_36 = arith.constant dense<0.000000e+00> : vector<8x32xf32>
    %95 = tpu.matmul %0, %3, %cst_36 {dimension_numbers = #tpu.dot_dimension_numbers<[1], [0], [0], [1], [0, 0, 1, 1], [], []>} : vector<8x16xf32>, vector<16x32xf32>, vector<8x32xf32> -> vector<8x32xf32>
    %cst_37 = arith.constant dense<0.000000e+00> : vector<64x32xf32>
    %96 = tpu.matmul %1, %4, %cst_37 {dimension_numbers = #tpu.dot_dimension_numbers<[1], [0], [0], [1], [0, 0, 1, 1], [], []>} : vector<64x8xf32>, vector<8x32xf32>, vector<64x32xf32> -> vector<64x32xf32>
    %cst_38 = arith.constant dense<0.000000e+00> : vector<64x32xf32>
    %97 = tpu.matmul %25, %94, %cst_38 {dimension_numbers = #tpu.dot_dimension_numbers<[1], [0], [0], [1], [0, 0, 1, 1], [], []>} : vector<64x8xf32>, vector<8x32xf32>, vector<64x32xf32> -> vector<64x32xf32>
    %cst_39 = arith.constant dense<0.000000e+00> : vector<64x32xf32>
    %98 = tpu.matmul %52, %95, %cst_39 {dimension_numbers = #tpu.dot_dimension_numbers<[1], [0], [0], [1], [0, 0, 1, 1], [], []>} : vector<64x8xf32>, vector<8x32xf32>, vector<64x32xf32> -> vector<64x32xf32>
    %99 = arith.addf %97, %98 : vector<64x32xf32>
    %100 = arith.addf %99, %96 : vector<64x32xf32>
    %101 = vector.broadcast %7 : vector<1x32xf32> to vector<64x32xf32>
    %102 = arith.addf %100, %101 : vector<64x32xf32>
    %cst_40 = arith.constant 0.000000e+00 : f32
    %103 = vector.broadcast %cst_40 : f32 to vector<64x32xf32>
    %104 = arith.cmpf oge, %102, %103 : vector<64x32xf32>
    %cst_41 = arith.constant 0.00999999977 : f32
    %105 = vector.broadcast %cst_41 : f32 to vector<64x32xf32>
    %106 = arith.mulf %105, %102 : vector<64x32xf32>
    %107 = arith.select %104, %102, %106 : vector<64x32xi1>, vector<64x32xf32>
    %cst_42 = arith.constant dense<0.000000e+00> : vector<32xf32>
    %108 = vector.multi_reduction <add>, %107, %cst_42 [0] : vector<64x32xf32> to vector<32xf32>
    %109 = vector.shape_cast %108 : vector<32xf32> to vector<1x32xf32>
    %cst_43 = arith.constant 6.400000e+01 : f32
    %110 = vector.broadcast %cst_43 : f32 to vector<1x32xf32>
    %111 = arith.divf %109, %110 : vector<1x32xf32>
    %112 = arith.mulf %107, %107 : vector<64x32xf32>
    %cst_44 = arith.constant dense<0.000000e+00> : vector<32xf32>
    %113 = vector.multi_reduction <add>, %112, %cst_44 [0] : vector<64x32xf32> to vector<32xf32>
    %114 = vector.shape_cast %113 : vector<32xf32> to vector<1x32xf32>
    %cst_45 = arith.constant 6.400000e+01 : f32
    %115 = vector.broadcast %cst_45 : f32 to vector<1x32xf32>
    %116 = arith.divf %114, %115 : vector<1x32xf32>
    %117 = arith.mulf %111, %111 : vector<1x32xf32>
    %118 = arith.subf %116, %117 : vector<1x32xf32>
    %cst_46 = arith.constant 0.000000e+00 : f32
    %119 = vector.broadcast %cst_46 : f32 to vector<1x32xf32>
    %120 = arith.maximumf %118, %119 : vector<1x32xf32>
    %121 = vector.broadcast %111 : vector<1x32xf32> to vector<64x32xf32>
    %122 = arith.subf %107, %121 : vector<64x32xf32>
    %123 = vector.broadcast %8 : vector<1x32xf32> to vector<64x32xf32>
    %124 = arith.mulf %123, %122 : vector<64x32xf32>
    %cst_47 = arith.constant 9.99999974E-6 : f32
    %125 = vector.broadcast %cst_47 : f32 to vector<1x32xf32>
    %126 = arith.addf %120, %125 : vector<1x32xf32>
    %127 = math.rsqrt %126 : vector<1x32xf32>
    %128 = vector.broadcast %127 : vector<1x32xf32> to vector<64x32xf32>
    %129 = arith.mulf %124, %128 : vector<64x32xf32>
    %130 = vector.broadcast %9 : vector<1x32xf32> to vector<64x32xf32>
    %131 = arith.addf %129, %130 : vector<64x32xf32>
    %cst_48 = arith.constant dense<0.000000e+00> : vector<64x16xf32>
    %132 = tpu.matmul %131, %5, %cst_48 {dimension_numbers = #tpu.dot_dimension_numbers<[1], [0], [0], [1], [0, 0, 1, 1], [], []>} : vector<64x32xf32>, vector<32x16xf32>, vector<64x16xf32> -> vector<64x16xf32>
    %133 = vector.broadcast %10 : vector<1x16xf32> to vector<64x16xf32>
    %134 = arith.addf %132, %133 : vector<64x16xf32>
    %cst_49 = arith.constant dense<0.000000e+00> : vector<64x9xf32>
    %135 = tpu.matmul %134, %6, %cst_49 {dimension_numbers = #tpu.dot_dimension_numbers<[1], [0], [0], [1], [0, 0, 1, 1], [], []>} : vector<64x16xf32>, vector<16x9xf32>, vector<64x9xf32> -> vector<64x9xf32>
    %136 = vector.broadcast %11 : vector<1x9xf32> to vector<64x9xf32>
    %137 = arith.addf %135, %136 : vector<64x9xf32>
    %138 = vector.extract_strided_slice %137 {offsets = [0, 0], sizes = [64, 1], strides = [1, 1]} : vector<64x9xf32> to vector<64x1xf32>
    %139 = vector.extract_strided_slice %137 {offsets = [0, 1], sizes = [64, 8], strides = [1, 1]} : vector<64x9xf32> to vector<64x8xf32>
    %140 = tpu.concatenate %134, %139 in 1 : vector<64x16xf32>, vector<64x8xf32> -> vector<64x24xf32>
    %c0_50 = arith.constant 0 : index
    %c0_51 = arith.constant 0 : index
    %141 = vector.load %arg4[%c0_50, %c0_51] : memref<64x24xf32, #tpu.memory_space<vmem>>, vector<64x24xf32>
    tpu.vector_store %arg4[%c0_50, %c0_51], %140 {strides = array<i32>} : memref<64x24xf32, #tpu.memory_space<vmem>>, vector<64x24xf32>,
    %142 = vector.broadcast %138 : vector<64x1xf32> to vector<64x8xf32>
    %143 = arith.mulf %142, %52 : vector<64x8xf32>
    %cst_52 = arith.constant dense<0.000000e+00> : vector<8x8xf32>
    %144 = tpu.matmul %66, %143, %cst_52 {dimension_numbers = #tpu.dot_dimension_numbers<[1], [0], [0], [1], [0, 0, 1, 1], [], []>} : vector<8x64xf32>, vector<64x8xf32>, vector<8x8xf32> -> vector<8x8xf32>
    %cst_53 = arith.constant dense<0xFF800000> : vector<8xf32>
    %145 = vector.multi_reduction <maximumf>, %144, %cst_53 [1] : vector<8x8xf32> to vector<8xf32>
    %146 = vector.shape_cast %145 : vector<8xf32> to vector<8x1xf32>
    %147 = vector.broadcast %146 : vector<8x1xf32> to vector<8x8xf32>
    %148 = arith.subf %144, %147 : vector<8x8xf32>
    %149 = math.exp %148 : vector<8x8xf32>
    %cst_54 = arith.constant dense<0.000000e+00> : vector<8xf32>
    %150 = vector.multi_reduction <add>, %149, %cst_54 [1] : vector<8x8xf32> to vector<8xf32>
    %151 = vector.shape_cast %150 : vector<8xf32> to vector<8x1xf32>
    %152 = vector.broadcast %151 : vector<8x1xf32> to vector<8x8xf32>
    %153 = arith.divf %149, %152 : vector<8x8xf32>
    %cst_55 = arith.constant dense<0.000000e+00> : vector<8x64xf32>
    %154 = tpu.matmul %153, %93, %cst_55 {dimension_numbers = #tpu.dot_dimension_numbers<[1], [0], [0], [1], [0, 0, 1, 1], [], []>} : vector<8x8xf32>, vector<8x64xf32>, vector<8x64xf32> -> vector<8x64xf32>
    %155 = arith.mulf %154, %66 : vector<8x64xf32>
    %cst_56 = arith.constant dense<0.000000e+00> : vector<8x16xf32>
    %156 = tpu.matmul %155, %134, %cst_56 {dimension_numbers = #tpu.dot_dimension_numbers<[1], [0], [0], [1], [0, 0, 1, 1], [], []>} : vector<8x64xf32>, vector<64x16xf32>, vector<8x16xf32> -> vector<8x16xf32>
    %c0_57 = arith.constant 0 : index
    %c0_58 = arith.constant 0 : index
    %157 = vector.load %arg5[%c0_57, %c0_58] : memref<8x16xf32, #tpu.memory_space<vmem>>, vector<8x16xf32>
    tpu.vector_store %arg5[%c0_57, %c0_58], %156 {strides = array<i32>} : memref<8x16xf32, #tpu.memory_space<vmem>>, vector<8x16xf32>,
    return
  }
}

</mosaic_0001>

<llo_original>
// kernel: semantic_relation_forward.1
$region0: #{semantic_relation_forward.1}
  #allocation0 [shape = 'u32[]', space=smem, size = 0x4, offset = 0x4, fixed_abs, tag = 'smem constant byte address 0x4 - core index']
  #allocation1 [shape = 'u32[144,128]{1,0:T(1,128)}', space=vmem, size = 0x12000, scoped, tag = 'internal scratch']
  %s0 = inlined_call_operand.vmem [shape: f32[8,16], index: 0, kind: input, shape index: {}]
  %s1 = inlined_call_operand.vmem [shape: f32[64,8], index: 1, kind: input, shape index: {}]
  %s2 = inlined_call_operand.vmem [shape: f32[88,32], index: 2, kind: input, shape index: {}]
  %s3 = inlined_call_operand.vmem [shape: f32[5,32], index: 3, kind: input, shape index: {}]
  %s4 = inlined_call_operand.vmem [shape: f32[64,24], index: 4, kind: output, shape index: {0}]
  %s5 = inlined_call_operand.hbm [shape: f32[8,16], index: 5, kind: output, shape index: {1}]
  %6 = xla_tuple %s4, %s5
  %s7 = sld [smem:[#allocation0]]
  $region34: #{semantic_relation_forward.1} parent=0
    _
  %s9 = ssub.s32 1, %s7
  %s10 = scalar_select 0, %s9, %s7
  $region1: #{semantic_relation_forward.1} parent=0
    #allocation2 [shape = 'u8[4096]{0}', space=vmem, size = 0x1000, scoped, tag = 'output window, operand 1, single buffered']
    #allocation3 [shape = 's32[1]{0}', space=sflag, size = 0x4, scoped, tag = 'scoped memory for semantic_relation_forward.1']
    %11 = vsyncpa [#allocation3], 0
    // Predicated region
    $region2: #{semantic_relation_forward.1} parent=1 // pred_check
      _
    $region3: #{semantic_relation_forward.1} parent=1 // pred_check_branch
      %13 = sbr.rel (0) target = $region5
    $region4: #{semantic_relation_forward.1} parent=1 // pred_region
      _
    $region5: #{semantic_relation_forward.1} parent=1 // pred_fallthru
      _
    // Predicated region
    $region6: #{semantic_relation_forward.1} parent=1 // pred_check
      _
    $region7: #{semantic_relation_forward.1} parent=1 // pred_check_branch
      %15 = sbr.rel (0) target = $region9
    $region8: #{semantic_relation_forward.1} parent=1 // pred_region
      _
    $region9: #{semantic_relation_forward.1} parent=1 // pred_fallthru
      _
    // Predicated region
    $region10: #{semantic_relation_forward.1} parent=1 // pred_check
      _
    $region11: #{semantic_relation_forward.1} parent=1 // pred_check_branch
      %17 = sbr.rel (0) target = $region13
    $region12: #{semantic_relation_forward.1} parent=1 // pred_region
      _
    $region13: #{semantic_relation_forward.1} parent=1 // pred_fallthru
      _
    // Predicated region
    $region14: #{semantic_relation_forward.1} parent=1 // pred_check
      _
    $region15: #{semantic_relation_forward.1} parent=1 // pred_check_branch
      %19 = sbr.rel (0) target = $region17
    $region16: #{semantic_relation_forward.1} parent=1 // pred_region
      _
    $region17: #{semantic_relation_forward.1} parent=1 // pred_fallthru
      _
    %v20 = vld [vmem:[%s0] sm:$0xff]
    %v21 = vld [vmem:[%s1] sm:$0xff]
    %v22 = vld [vmem:[%s1 + $0x8] sm:$0xff]
    %v23 = vld [vmem:[%s1 + $0x10] sm:$0xff]
    %v24 = vld [vmem:[%s1 + $0x18] sm:$0xff]
    %v25 = vld [vmem:[%s1 + $0x20] sm:$0xff]
    %v26 = vld [vmem:[%s1 + $0x28] sm:$0xff]
    %v27 = vld [vmem:[%s1 + $0x30] sm:$0xff]
    %v28 = vld [vmem:[%s1 + $0x38] sm:$0xff]
    %v29 = vld [vmem:[%s2] sm:$0xff]
    %v30 = vld [vmem:[%s2 + $0x8] sm:$0xff]
    %v31 = vld [vmem:[%s2 + $0x10] sm:$0xff]
    %v32 = vld [vmem:[%s2 + $0x18] sm:$0xff]
    %v33 = vld [vmem:[%s2 + $0x20] sm:$0xff]
    %v34 = vld [vmem:[%s2 + $0x28] sm:$0xff]
    %v35 = vld [vmem:[%s2 + $0x30] sm:$0xff]
    %v36 = vld [vmem:[%s2 + $0x38] sm:$0xff]
    %v37 = vld [vmem:[%s2 + $0x40] sm:$0xff]
    %v38 = vld [vmem:[%s2 + $0x48] sm:$0xff]
    %v39 = vld [vmem:[%s2 + $0x50] sm:$0xff]
    %v40 = vld [vmem:[%s3] sm:$0x1]
    %v41 = vld [vmem:[%s3 + $0x1] sm:$0x1]
    %v42 = vld [vmem:[%s3 + $0x2] sm:$0x1]
    %v43 = vld [vmem:[%s3 + $0x3] sm:$0x1]
    %v44 = vld [vmem:[%s3 + $0x4] sm:$0x1]
    %v45 = vlaneseq
    %v46 = vshrl.u32 %v45, 7
    %v47 = vadd.s32 %v46, 8
    %v48 = vadd.s32 %v46, 16
    %v49 = vadd.s32 %v46, 24
    %v50 = vadd.s32 %v46, 32
    %v51 = vadd.s32 %v46, 40
    %v52 = vadd.s32 %v46, 48
    %v53 = vadd.s32 %v46, 56
    %v54 = vlaneseq
    %v55 = vand.u32 %v54, 127
    %v56 = vmul.u32 %v55, 8
    %vm57 = vcmp.ge.s32.totalorder %v46, %v56
    %vm58 = vcmp.ge.s32.totalorder %v47, %v56
    %vm59 = vcmp.ge.s32.totalorder %v48, %v56
    %vm60 = vcmp.ge.s32.totalorder %v49, %v56
    %vm61 = vcmp.ge.s32.totalorder %v50, %v56
    %vm62 = vcmp.ge.s32.totalorder %v51, %v56
    %vm63 = vcmp.ge.s32.totalorder %v52, %v56
    %vm64 = vcmp.ge.s32.totalorder %v53, %v56
    %v65 = vadd.s32 %v55, 1
    %v66 = vmul.u32 %v65, 8
    %vm67 = vcmp.lt.s32.totalorder %v46, %v66
    %vm68 = vcmp.lt.s32.totalorder %v47, %v66
    %vm69 = vcmp.lt.s32.totalorder %v48, %v66
    %vm70 = vcmp.lt.s32.totalorder %v49, %v66
    %vm71 = vcmp.lt.s32.totalorder %v50, %v66
    %vm72 = vcmp.lt.s32.totalorder %v51, %v66
    %vm73 = vcmp.lt.s32.totalorder %v52, %v66
    %vm74 = vcmp.lt.s32.totalorder %v53, %v66
    %vm75 = vmand %vm57, %vm67
    %vm76 = vmand %vm58, %vm68
    %vm77 = vmand %vm59, %vm69
    %vm78 = vmand %vm60, %vm70
    %vm79 = vmand %vm61, %vm71
    %vm80 = vmand %vm62, %vm72
    %vm81 = vmand %vm63, %vm73
    %vm82 = vmand %vm64, %vm74
    %v83 = vsel %vm75, 1.0, 0.0
    %v84 = vsel %vm76, 1.0, 0.0
    %v85 = vsel %vm77, 1.0, 0.0
    %v86 = vsel %vm78, 1.0, 0.0
    %v87 = vsel %vm79, 1.0, 0.0
    %v88 = vsel %vm80, 1.0, 0.0
    %v89 = vsel %vm81, 1.0, 0.0
    %v90 = vsel %vm82, 1.0, 0.0
    %v91 = vsub.s32 %v46, %v55
    %v92 = vsub.s32 %v47, %v55
    %v93 = vsub.s32 %v48, %v55
    %v94 = vsub.s32 %v49, %v55
    %v95 = vsub.s32 %v50, %v55
    %v96 = vsub.s32 %v51, %v55
    %v97 = vsub.s32 %v52, %v55
    %v98 = vsub.s32 %v53, %v55
    %vm99 = vcmp.eq.s32.totalorder %v91, 0
    %vm100 = vcmp.eq.s32.totalorder %v92, 0
    %vm101 = vcmp.eq.s32.totalorder %v93, 0
    %vm102 = vcmp.eq.s32.totalorder %v94, 0
    %vm103 = vcmp.eq.s32.totalorder %v95, 0
    %vm104 = vcmp.eq.s32.totalorder %v96, 0
    %vm105 = vcmp.eq.s32.totalorder %v97, 0
    %vm106 = vcmp.eq.s32.totalorder %v98, 0
    %vm107 = vcmp.eq.s32.totalorder %v91, 8
    %vm108 = vcmp.eq.s32.totalorder %v92, 8
    %vm109 = vcmp.eq.s32.totalorder %v93, 8
    %vm110 = vcmp.eq.s32.totalorder %v94, 8
    %vm111 = vcmp.eq.s32.totalorder %v95, 8
    %vm112 = vcmp.eq.s32.totalorder %v96, 8
    %vm113 = vcmp.eq.s32.totalorder %v97, 8
    %vm114 = vcmp.eq.s32.totalorder %v98, 8
    %vm115 = vmor %vm99, %vm107
    %vm116 = vmor %vm100, %vm108
    %vm117 = vmor %vm101, %vm109
    %vm118 = vmor %vm102, %vm110
    %vm119 = vmor %vm103, %vm111
    %vm120 = vmor %vm104, %vm112
    %vm121 = vmor %vm105, %vm113
    %vm122 = vmor %vm106, %vm114
    %vm123 = vcmp.eq.s32.totalorder %v91, 16
    %vm124 = vcmp.eq.s32.totalorder %v92, 16
    %vm125 = vcmp.eq.s32.totalorder %v93, 16
    %vm126 = vcmp.eq.s32.totalorder %v94, 16
    %vm127 = vcmp.eq.s32.totalorder %v95, 16
    %vm128 = vcmp.eq.s32.totalorder %v96, 16
    %vm129 = vcmp.eq.s32.totalorder %v97, 16
    %vm130 = vcmp.eq.s32.totalorder %v98, 16
    %vm131 = vmor %vm115, %vm123
    %vm132 = vmor %vm116, %vm124
    %vm133 = vmor %vm117, %vm125
    %vm134 = vmor %vm118, %vm126
    %vm135 = vmor %vm119, %vm127
    %vm136 = vmor %vm120, %vm128
    %vm137 = vmor %vm121, %vm129
    %vm138 = vmor %vm122, %vm130
    %vm139 = vcmp.eq.s32.totalorder %v91, 24
    %vm140 = vcmp.eq.s32.totalorder %v92, 24
    %vm141 = vcmp.eq.s32.totalorder %v93, 24
    %vm142 = vcmp.eq.s32.totalorder %v94, 24
    %vm143 = vcmp.eq.s32.totalorder %v95, 24
    %vm144 = vcmp.eq.s32.totalorder %v96, 24
    %vm145 = vcmp.eq.s32.totalorder %v97, 24
    %vm146 = vcmp.eq.s32.totalorder %v98, 24
    %vm147 = vmor %vm131, %vm139
    %vm148 = vmor %vm132, %vm140
    %vm149 = vmor %vm133, %vm141
    %vm150 = vmor %vm134, %vm142
    %vm151 = vmor %vm135, %vm143
    %vm152 = vmor %vm136, %vm144
    %vm153 = vmor %vm137, %vm145
    %vm154 = vmor %vm138, %vm146
    %vm155 = vcmp.eq.s32.totalorder %v91, 32
    %vm156 = vcmp.eq.s32.totalorder %v92, 32
    %vm157 = vcmp.eq.s32.totalorder %v93, 32
    %vm158 = vcmp.eq.s32.totalorder %v94, 32
    %vm159 = vcmp.eq.s32.totalorder %v95, 32
    %vm160 = vcmp.eq.s32.totalorder %v96, 32
    %vm161 = vcmp.eq.s32.totalorder %v97, 32
    %vm162 = vcmp.eq.s32.totalorder %v98, 32
    %vm163 = vmor %vm147, %vm155
    %vm164 = vmor %vm148, %vm156
    %vm165 = vmor %vm149, %vm157
    %vm166 = vmor %vm150, %vm158
    %vm167 = vmor %vm151, %vm159
    %vm168 = vmor %vm152, %vm160
    %vm169 = vmor %vm153, %vm161
    %vm170 = vmor %vm154, %vm162
    %vm171 = vcmp.eq.s32.totalorder %v91, 40
    %vm172 = vcmp.eq.s32.totalorder %v92, 40
    %vm173 = vcmp.eq.s32.totalorder %v93, 40
    %vm174 = vcmp.eq.s32.totalorder %v94, 40
    %vm175 = vcmp.eq.s32.totalorder %v95, 40
    %vm176 = vcmp.eq.s32.totalorder %v96, 40
    %vm177 = vcmp.eq.s32.totalorder %v97, 40
    %vm178 = vcmp.eq.s32.totalorder %v98, 40
    %vm179 = vmor %vm163, %vm171
    %vm180 = vmor %vm164, %vm172
    %vm181 = vmor %vm165, %vm173
    %vm182 = vmor %vm166, %vm174
    %vm183 = vmor %vm167, %vm175
    %vm184 = vmor %vm168, %vm176
    %vm185 = vmor %vm169, %vm177
    %vm186 = vmor %vm170, %vm178
    %vm187 = vcmp.eq.s32.totalorder %v91, 48
    %vm188 = vcmp.eq.s32.totalorder %v92, 48
    %vm189 = vcmp.eq.s32.totalorder %v93, 48
    %vm190 = vcmp.eq.s32.totalorder %v94, 48
    %vm191 = vcmp.eq.s32.totalorder %v95, 48
    %vm192 = vcmp.eq.s32.totalorder %v96, 48
    %vm193 = vcmp.eq.s32.totalorder %v97, 48
    %vm194 = vcmp.eq.s32.totalorder %v98, 48
    %vm195 = vmor %vm179, %vm187
    %vm196 = vmor %vm180, %vm188
    %vm197 = vmor %vm181, %vm189
    %vm198 = vmor %vm182, %vm190
    %vm199 = vmor %vm183, %vm191
    %vm200 = vmor %vm184, %vm192
    %vm201 = vmor %vm185, %vm193
    %vm202 = vmor %vm186, %vm194
    %vm203 = vcmp.eq.s32.totalorder %v91, 56
    %vm204 = vcmp.eq.s32.totalorder %v92, 56
    %vm205 = vcmp.eq.s32.totalorder %v93, 56
    %vm206 = vcmp.eq.s32.totalorder %v94, 56
    %vm207 = vcmp.eq.s32.totalorder %v95, 56
    %vm208 = vcmp.eq.s32.totalorder %v96, 56
    %vm209 = vcmp.eq.s32.totalorder %v97, 56
    %vm210 = vcmp.eq.s32.totalorder %v98, 56
    %vm211 = vmor %vm195, %vm203
    %vm212 = vmor %vm196, %vm204
    %vm213 = vmor %vm197, %vm205
    %vm214 = vmor %vm198, %vm206
    %vm215 = vmor %vm199, %vm207
    %vm216 = vmor %vm200, %vm208
    %vm217 = vmor %vm201, %vm209
    %vm218 = vmor %vm202, %vm210
    %v219 = vsel %vm211, 1.0, 0.0
    %v220 = vsel %vm212, 1.0, 0.0
    %v221 = vsel %vm213, 1.0, 0.0
    %v222 = vsel %vm214, 1.0, 0.0
    %v223 = vsel %vm215, 1.0, 0.0
    %v224 = vsel %vm216, 1.0, 0.0
    %v225 = vsel %vm217, 1.0, 0.0
    %v226 = vsel %vm218, 1.0, 0.0
    %v227 = vmul.u32 %v46, 8
    %vm228 = vcmp.ge.s32.totalorder %v55, %v227
    %v229 = vadd.s32 %v46, 1
    %v230 = vmul.u32 %v229, 8
    %vm231 = vcmp.lt.s32.totalorder %v55, %v230
    %vm232 = vmand %vm228, %vm231
    %v233 = vsel %vm232, 1.0, 0.0
    %v234 = vsub.s32 %v55, %v46
    %vm235 = vcmp.eq.s32.totalorder %v234, 0
    %vm236 = vcmp.eq.s32.totalorder %v234, 8
    %vm237 = vmor %vm235, %vm236
    %vm238 = vcmp.eq.s32.totalorder %v234, 16
    %vm239 = vmor %vm237, %vm238
    %vm240 = vcmp.eq.s32.totalorder %v234, 24
    %vm241 = vmor %vm239, %vm240
    %vm242 = vcmp.eq.s32.totalorder %v234, 32
    %vm243 = vmor %vm241, %vm242
    %vm244 = vcmp.eq.s32.totalorder %v234, 40
    %vm245 = vmor %vm243, %vm244
    %vm246 = vcmp.eq.s32.totalorder %v234, 48
    %vm247 = vmor %vm245, %vm246
    %vm248 = vcmp.eq.s32.totalorder %v234, 56
    %vm249 = vmor %vm247, %vm248
    %v250 = vsel %vm249, 1.0, 0.0
    %vm251 = vcmask 130048
    %v253 = vsel %vm251, %v20, 0
    %255 = vmatprep.subr.mxu0 0.0
    %256 = vmatpush1.msra.mxu0 0.0
    %257 = vmatprep.subr.mxu0 0.0
    %258 = vmatpush1.msra.mxu0 0.0
    %259 = vmatprep.subr.mxu0 0.0
    %260 = vmatpush1.msra.mxu0 0.0
    %261 = vmatprep.subr.mxu0 0.0
    %262 = vmatpush1.msra.mxu0 0.0
    %263 = vmatprep.subr.mxu0 0.0
    %264 = vmatpush1.msra.mxu0 0.0
    %265 = vmatprep.subr.mxu0 0.0
    %266 = vmatpush1.msra.mxu0 0.0
    %267 = vmatprep.subr.mxu0 0.0
    %268 = vmatpush1.msra.mxu0 0.0
    %269 = vmatprep.subr.mxu0 0.0
    %270 = vmatpush1.msra.mxu0 0.0
    %271 = vmatprep.subr.mxu0 0.0
    %272 = vmatpush1.msra.mxu0 0.0
    %273 = vmatprep.subr.mxu0 0.0
    %274 = vmatpush1.msra.mxu0 0.0
    %275 = vmatprep.subr.mxu0 0.0
    %276 = vmatpush1.msra.mxu0 0.0
    %277 = vmatprep.subr.mxu0 0.0
    %278 = vmatpush1.msra.mxu0 0.0
    %279 = vmatprep.subr.mxu0 0.0
    %280 = vmatpush1.msra.mxu0 0.0
    %281 = vmatprep.subr.mxu0 0.0
    %282 = vmatpush1.msra.mxu0 0.0
    %283 = vmatprep.subr.mxu0 0.0
    %284 = vmatpush1.msra.mxu0 %v30
    %285 = vmatprep.subr.mxu0 0.0
    %286 = vmatpush1.msra.mxu0 %v29
    %287 = vmatprep.subr.mxu0 0.0
    %288 = vmatpush2.msra.mxu0 0.0
    %289 = vmatprep.subr.mxu0 0.0
    %290 = vmatpush2.msra.mxu0 0.0
    %291 = vmatprep.subr.mxu0 0.0
    %292 = vmatpush2.msra.mxu0 0.0
    %293 = vmatprep.subr.mxu0 0.0
    %294 = vmatpush2.msra.mxu0 0.0
    %295 = vmatprep.subr.mxu0 0.0
    %296 = vmatpush2.msra.mxu0 0.0
    %297 = vmatprep.subr.mxu0 0.0
    %298 = vmatpush2.msra.mxu0 0.0
    %299 = vmatprep.subr.mxu0 0.0
    %300 = vmatpush2.msra.mxu0 0.0
    %301 = vmatprep.subr.mxu0 0.0
    %302 = vmatpush2.msra.mxu0 0.0
    %303 = vmatprep.subr.mxu0 0.0
    %304 = vmatpush2.msra.mxu0 0.0
    %305 = vmatprep.subr.mxu0 0.0
    %306 = vmatpush2.msra.mxu0 0.0
    %307 = vmatprep.subr.mxu0 0.0
    %308 = vmatpush2.msra.mxu0 0.0
    %309 = vmatprep.subr.mxu0 0.0
    %310 = vmatpush2.msra.mxu0 0.0
    %311 = vmatprep.subr.mxu0 0.0
    %312 = vmatpush2.msra.mxu0 0.0
    %313 = vmatprep.subr.mxu0 0.0
    %314 = vmatpush2.msra.mxu0 0.0
    %315 = vmatprep.subr.mxu0 0.0
    %316 = vmatpush2.msra.mxu0 0.0
    %317 = vmatprep.subr.mxu0 0.0
    %318 = vmatpush2.msra.mxu0 0.0
    %319 = vmatprep.mubr.f32.mxu0 0.0
    %320 = vmatmul.mubr.f32.gmra.mxu0 %v253
    %v321 = vpop.f32.mrf.mxu0
    %v322 = vadd.f32 0.0, %v321
    %v323 = vpop.f32.mrf.mxu0
    %324 = vdwg.mxu0
    %325 = vmatprep.subr.mxu0 0.0
    %326 = vmatpush1.msra.mxu0 0.0
    %327 = vmatprep.subr.mxu0 0.0
    %328 = vmatpush1.msra.mxu0 0.0
    %329 = vmatprep.subr.mxu0 0.0
    %330 = vmatpush1.msra.mxu0 0.0
    %331 = vmatprep.subr.mxu0 0.0
    %332 = vmatpush1.msra.mxu0 0.0
    %333 = vmatprep.subr.mxu0 0.0
    %334 = vmatpush1.msra.mxu0 0.0
    %335 = vmatprep.subr.mxu0 0.0
    %336 = vmatpush1.msra.mxu0 0.0
    %337 = vmatprep.subr.mxu0 0.0
    %338 = vmatpush1.msra.mxu0 0.0
    %339 = vmatprep.subr.mxu0 0.0
    %340 = vmatpush1.msra.mxu0 0.0
    %341 = vmatprep.subr.mxu0 0.0
    %342 = vmatpush1.msra.mxu0 0.0
    %343 = vmatprep.subr.mxu0 0.0
    %344 = vmatpush1.msra.mxu0 0.0
    %345 = vmatprep.subr.mxu0 0.0
    %346 = vmatpush1.msra.mxu0 0.0
    %347 = vmatprep.subr.mxu0 0.0
    %348 = vmatpush1.msra.mxu0 0.0
    %349 = vmatprep.subr.mxu0 0.0
    %350 = vmatpush1.msra.mxu0 0.0
    %351 = vmatprep.subr.mxu0 0.0
    %352 = vmatpush1.msra.mxu0 0.0
    %353 = vmatprep.subr.mxu0 0.0
    %354 = vmatpush1.msra.mxu0 %v32
    %355 = vmatprep.subr.mxu0 0.0
    %356 = vmatpush1.msra.mxu0 %v31
    %357 = vmatprep.subr.mxu0 0.0
    %358 = vmatpush2.msra.mxu0 0.0
    %359 = vmatprep.subr.mxu0 0.0
    %360 = vmatpush2.msra.mxu0 0.0
    %361 = vmatprep.subr.mxu0 0.0
    %362 = vmatpush2.msra.mxu0 0.0
    %363 = vmatprep.subr.mxu0 0.0
    %364 = vmatpush2.msra.mxu0 0.0
    %365 = vmatprep.subr.mxu0 0.0
    %366 = vmatpush2.msra.mxu0 0.0
    %367 = vmatprep.subr.mxu0 0.0
    %368 = vmatpush2.msra.mxu0 0.0
    %369 = vmatprep.subr.mxu0 0.0
    %370 = vmatpush2.msra.mxu0 0.0
    %371 = vmatprep.subr.mxu0 0.0
    %372 = vmatpush2.msra.mxu0 0.0
    %373 = vmatprep.subr.mxu0 0.0
    %374 = vmatpush2.msra.mxu0 0.0
    %375 = vmatprep.subr.mxu0 0.0
    %376 = vmatpush2.msra.mxu0 0.0
    %377 = vmatprep.subr.mxu0 0.0
    %378 = vmatpush2.msra.mxu0 0.0
    %379 = vmatprep.subr.mxu0 0.0
    %380 = vmatpush2.msra.mxu0 0.0
    %381 = vmatprep.subr.mxu0 0.0
    %382 = vmatpush2.msra.mxu0 0.0
    %383 = vmatprep.subr.mxu0 0.0
    %384 = vmatpush2.msra.mxu0 0.0
    %385 = vmatprep.subr.mxu0 0.0
    %386 = vmatpush2.msra.mxu0 0.0
    %387 = vmatprep.subr.mxu0 0.0
    %388 = vmatpush2.msra.mxu0 0.0
    %389 = vmatprep.mubr.f32.mxu0 0.0
    %390 = vmatmul.mubr.f32.gmra.mxu0 %v253
    %v391 = vpop.f32.mrf.mxu0
    %v392 = vadd.f32 0.0, %v391
    %v393 = vpop.f32.mrf.mxu0
    %394 = vdwg.mxu0
    %vm395 = vcmask 64512
    %v397 = vsel %vm395, %v21, 0
    %v400 = vsel %vm395, %v22, 0
    %v403 = vsel %vm395, %v23, 0
    %v406 = vsel %vm395, %v24, 0
    %v409 = vsel %vm395, %v25, 0
    %v412 = vsel %vm395, %v26, 0
    %v415 = vsel %vm395, %v27, 0
    %v418 = vsel %vm395, %v28, 0
    %420 = vmatprep.subr.mxu0 0.0
    %421 = vmatpush1.msra.mxu0 0.0
    %422 = vmatprep.subr.mxu0 0.0
    %423 = vmatpush1.msra.mxu0 0.0
    %424 = vmatprep.subr.mxu0 0.0
    %425 = vmatpush1.msra.mxu0 0.0
    %426 = vmatprep.subr.mxu0 0.0
    %427 = vmatpush1.msra.mxu0 0.0
    %428 = vmatprep.subr.mxu0 0.0
    %429 = vmatpush1.msra.mxu0 0.0
    %430 = vmatprep.subr.mxu0 0.0
    %431 = vmatpush1.msra.mxu0 0.0
    %432 = vmatprep.subr.mxu0 0.0
    %433 = vmatpush1.msra.mxu0 0.0
    %434 = vmatprep.subr.mxu0 0.0
    %435 = vmatpush1.msra.mxu0 0.0
    %436 = vmatprep.subr.mxu0 0.0
    %437 = vmatpush1.msra.mxu0 0.0
    %438 = vmatprep.subr.mxu0 0.0
    %439 = vmatpush1.msra.mxu0 0.0
    %440 = vmatprep.subr.mxu0 0.0
    %441 = vmatpush1.msra.mxu0 0.0
    %442 = vmatprep.subr.mxu0 0.0
    %443 = vmatpush1.msra.mxu0 0.0
    %444 = vmatprep.subr.mxu0 0.0
    %445 = vmatpush1.msra.mxu0 0.0
    %446 = vmatprep.subr.mxu0 0.0
    %447 = vmatpush1.msra.mxu0 0.0
    %448 = vmatprep.subr.mxu0 0.0
    %449 = vmatpush1.msra.mxu0 0.0
    %450 = vmatprep.subr.mxu0 0.0
    %451 = vmatpush1.msra.mxu0 %v33
    %452 = vmatprep.subr.mxu0 0.0
    %453 = vmatpush2.msra.mxu0 0.0
    %454 = vmatprep.subr.mxu0 0.0
    %455 = vmatpush2.msra.mxu0 0.0
    %456 = vmatprep.subr.mxu0 0.0
    %457 = vmatpush2.msra.mxu0 0.0
    %458 = vmatprep.subr.mxu0 0.0
    %459 = vmatpush2.msra.mxu0 0.0
    %460 = vmatprep.subr.mxu0 0.0
    %461 = vmatpush2.msra.mxu0 0.0
    %462 = vmatprep.subr.mxu0 0.0
    %463 = vmatpush2.msra.mxu0 0.0
    %464 = vmatprep.subr.mxu0 0.0
    %465 = vmatpush2.msra.mxu0 0.0
    %466 = vmatprep.subr.mxu0 0.0
    %467 = vmatpush2.msra.mxu0 0.0
    %468 = vmatprep.subr.mxu0 0.0
    %469 = vmatpush2.msra.mxu0 0.0
    %470 = vmatprep.subr.mxu0 0.0
    %471 = vmatpush2.msra.mxu0 0.0
    %472 = vmatprep.subr.mxu0 0.0
    %473 = vmatpush2.msra.mxu0 0.0
    %474 = vmatprep.subr.mxu0 0.0
    %475 = vmatpush2.msra.mxu0 0.0
    %476 = vmatprep.subr.mxu0 0.0
    %477 = vmatpush2.msra.mxu0 0.0
    %478 = vmatprep.subr.mxu0 0.0
    %479 = vmatpush2.msra.mxu0 0.0
    %480 = vmatprep.subr.mxu0 0.0
    %481 = vmatpush2.msra.mxu0 0.0
    %482 = vmatprep.subr.mxu0 0.0
    %483 = vmatpush2.msra.mxu0 0.0
    %484 = vmatprep.mubr.f32.mxu0 0.0
    %485 = vmatmul.mubr.f32.gmra.mxu0 %v397
    %v486 = vpop.f32.mrf.mxu0
    %v487 = vadd.f32 0.0, %v486
    %v488 = vpop.f32.mrf.mxu0
    %489 = vmatprep.mubr.f32.mxu0 0.0
    %490 = vmatmul.mubr.f32.gmra.mxu0 %v400
    %v491 = vpop.f32.mrf.mxu0
    %v492 = vadd.f32 0.0, %v491
    %v493 = vpop.f32.mrf.mxu0
    %494 = vmatprep.mubr.f32.mxu0 0.0
    %495 = vmatmul.mubr.f32.gmra.mxu0 %v403
    %v496 = vpop.f32.mrf.mxu0
    %v497 = vadd.f32 0.0, %v496
    %v498 = vpop.f32.mrf.mxu0
    %499 = vmatprep.mubr.f32.mxu0 0.0
    %500 = vmatmul.mubr.f32.gmra.mxu0 %v406
    %v501 = vpop.f32.mrf.mxu0
    %v502 = vadd.f32 0.0, %v501
    %v503 = vpop.f32.mrf.mxu0
    %504 = vmatprep.mubr.f32.mxu0 0.0
    %505 = vmatmul.mubr.f32.gmra.mxu0 %v409
    %v506 = vpop.f32.mrf.mxu0
    %v507 = vadd.f32 0.0, %v506
    %v508 = vpop.f32.mrf.mxu0
    %509 = vmatprep.mubr.f32.mxu0 0.0
    %510 = vmatmul.mubr.f32.gmra.mxu0 %v412
    %v511 = vpop.f32.mrf.mxu0
    %v512 = vadd.f32 0.0, %v511
    %v513 = vpop.f32.mrf.mxu0
    %514 = vmatprep.mubr.f32.mxu0 0.0
    %515 = vmatmul.mubr.f32.gmra.mxu0 %v415
    %v516 = vpop.f32.mrf.mxu0
    %v517 = vadd.f32 0.0, %v516
    %v518 = vpop.f32.mrf.mxu0
    %519 = vmatprep.mubr.f32.mxu0 0.0
    %520 = vmatmul.mubr.f32.gmra.mxu0 %v418
    %v521 = vpop.f32.mrf.mxu0
    %v522 = vadd.f32 0.0, %v521
    %v523 = vpop.f32.mrf.mxu0
    %524 = vdwg.mxu0
    %v526 = vsel %vm395, %v219, 0
    %v529 = vsel %vm395, %v220, 0
    %v532 = vsel %vm395, %v221, 0
    %v535 = vsel %vm395, %v222, 0
    %v538 = vsel %vm395, %v223, 0
    %v541 = vsel %vm395, %v224, 0
    %v544 = vsel %vm395, %v225, 0
    %v547 = vsel %vm395, %v226, 0
    %549 = vmatprep.subr.mxu0 0.0
    %550 = vmatpush1.msra.mxu0 0.0
    %551 = vmatprep.subr.mxu0 0.0
    %552 = vmatpush1.msra.mxu0 0.0
    %553 = vmatprep.subr.mxu0 0.0
    %554 = vmatpush1.msra.mxu0 0.0
    %555 = vmatprep.subr.mxu0 0.0
    %556 = vmatpush1.msra.mxu0 0.0
    %557 = vmatprep.subr.mxu0 0.0
    %558 = vmatpush1.msra.mxu0 0.0
    %559 = vmatprep.subr.mxu0 0.0
    %560 = vmatpush1.msra.mxu0 0.0
    %561 = vmatprep.subr.mxu0 0.0
    %562 = vmatpush1.msra.mxu0 0.0
    %563 = vmatprep.subr.mxu0 0.0
    %564 = vmatpush1.msra.mxu0 0.0
    %565 = vmatprep.subr.mxu0 0.0
    %566 = vmatpush1.msra.mxu0 0.0
    %567 = vmatprep.subr.mxu0 0.0
    %568 = vmatpush1.msra.mxu0 0.0
    %569 = vmatprep.subr.mxu0 0.0
    %570 = vmatpush1.msra.mxu0 0.0
    %571 = vmatprep.subr.mxu0 0.0
    %572 = vmatpush1.msra.mxu0 0.0
    %573 = vmatprep.subr.mxu0 0.0
    %574 = vmatpush1.msra.mxu0 0.0
    %575 = vmatprep.subr.mxu0 0.0
    %576 = vmatpush1.msra.mxu0 0.0
    %577 = vmatprep.subr.mxu0 0.0
    %578 = vmatpush1.msra.mxu0 0.0
    %579 = vmatprep.subr.mxu0 0.0
    %580 = vmatpush1.msra.mxu0 %v392
    %581 = vmatprep.subr.mxu0 0.0
    %582 = vmatpush2.msra.mxu0 0.0
    %583 = vmatprep.subr.mxu0 0.0
    %584 = vmatpush2.msra.mxu0 0.0
    %585 = vmatprep.subr.mxu0 0.0
    %586 = vmatpush2.msra.mxu0 0.0
    %587 = vmatprep.subr.mxu0 0.0
    %588 = vmatpush2.msra.mxu0 0.0
    %589 = vmatprep.subr.mxu0 0.0
    %590 = vmatpush2.msra.mxu0 0.0
    %591 = vmatprep.subr.mxu0 0.0
    %592 = vmatpush2.msra.mxu0 0.0
    %593 = vmatprep.subr.mxu0 0.0
    %594 = vmatpush2.msra.mxu0 0.0
    %595 = vmatprep.subr.mxu0 0.0
    %596 = vmatpush2.msra.mxu0 0.0
    %597 = vmatprep.subr.mxu0 0.0
    %598 = vmatpush2.msra.mxu0 0.0
    %599 = vmatprep.subr.mxu0 0.0
    %600 = vmatpush2.msra.mxu0 0.0
    %601 = vmatprep.subr.mxu0 0.0
    %602 = vmatpush2.msra.mxu0 0.0
    %603 = vmatprep.subr.mxu0 0.0
    %604 = vmatpush2.msra.mxu0 0.0
    %605 = vmatprep.subr.mxu0 0.0
    %606 = vmatpush2.msra.mxu0 0.0
    %607 = vmatprep.subr.mxu0 0.0
    %608 = vmatpush2.msra.mxu0 0.0
    %609 = vmatprep.subr.mxu0 0.0
    %610 = vmatpush2.msra.mxu0 0.0
    %611 = vmatprep.subr.mxu0 0.0
    %612 = vmatpush2.msra.mxu0 0.0
    %613 = vmatprep.mubr.f32.mxu0 0.0
    %614 = vmatmul.mubr.f32.gmra.mxu0 %v526
    %v615 = vpop.f32.mrf.mxu0
    %v616 = vadd.f32 0.0, %v615
    %v617 = vpop.f32.mrf.mxu0
    %618 = vmatprep.mubr.f32.mxu0 0.0
    %619 = vmatmul.mubr.f32.gmra.mxu0 %v529
    %v620 = vpop.f32.mrf.mxu0
    %v621 = vadd.f32 0.0, %v620
    %v622 = vpop.f32.mrf.mxu0
    %623 = vmatprep.mubr.f32.mxu0 0.0
    %624 = vmatmul.mubr.f32.gmra.mxu0 %v532
    %v625 = vpop.f32.mrf.mxu0
    %v626 = vadd.f32 0.0, %v625
    %v627 = vpop.f32.mrf.mxu0
    %628 = vmatprep.mubr.f32.mxu0 0.0
    %629 = vmatmul.mubr.f32.gmra.mxu0 %v535
    %v630 = vpop.f32.mrf.mxu0
    %v631 = vadd.f32 0.0, %v630
    %v632 = vpop.f32.mrf.mxu0
    %633 = vmatprep.mubr.f32.mxu0 0.0
    %634 = vmatmul.mubr.f32.gmra.mxu0 %v538
    %v635 = vpop.f32.mrf.mxu0
    %v636 = vadd.f32 0.0, %v635
    %v637 = vpop.f32.mrf.mxu0
    %638 = vmatprep.mubr.f32.mxu0 0.0
    %639 = vmatmul.mubr.f32.gmra.mxu0 %v541
    %v640 = vpop.f32.mrf.mxu0
    %v641 = vadd.f32 0.0, %v640
    %v642 = vpop.f32.mrf.mxu0
    %643 = vmatprep.mubr.f32.mxu0 0.0
    %644 = vmatmul.mubr.f32.gmra.mxu0 %v544
    %v645 = vpop.f32.mrf.mxu0
    %v646 = vadd.f32 0.0, %v645
    %v647 = vpop.f32.mrf.mxu0
    %648 = vmatprep.mubr.f32.mxu0 0.0
    %649 = vmatmul.mubr.f32.gmra.mxu0 %v547
    %v650 = vpop.f32.mrf.mxu0
    %v651 = vadd.f32 0.0, %v650
    %v652 = vpop.f32.mrf.mxu0
    %653 = vdwg.mxu0
    %v655 = vsel %vm395, %v83, 0
    %v658 = vsel %vm395, %v84, 0
    %v661 = vsel %vm395, %v85, 0
    %v664 = vsel %vm395, %v86, 0
    %v667 = vsel %vm395, %v87, 0
    %v670 = vsel %vm395, %v88, 0
    %v673 = vsel %vm395, %v89, 0
    %v676 = vsel %vm395, %v90, 0
    %678 = vmatprep.subr.mxu0 0.0
    %679 = vmatpush1.msra.mxu0 0.0
    %680 = vmatprep.subr.mxu0 0.0
    %681 = vmatpush1.msra.mxu0 0.0
    %682 = vmatprep.subr.mxu0 0.0
    %683 = vmatpush1.msra.mxu0 0.0
    %684 = vmatprep.subr.mxu0 0.0
    %685 = vmatpush1.msra.mxu0 0.0
    %686 = vmatprep.subr.mxu0 0.0
    %687 = vmatpush1.msra.mxu0 0.0
    %688 = vmatprep.subr.mxu0 0.0
    %689 = vmatpush1.msra.mxu0 0.0
    %690 = vmatprep.subr.mxu0 0.0
    %691 = vmatpush1.msra.mxu0 0.0
    %692 = vmatprep.subr.mxu0 0.0
    %693 = vmatpush1.msra.mxu0 0.0
    %694 = vmatprep.subr.mxu0 0.0
    %695 = vmatpush1.msra.mxu0 0.0
    %696 = vmatprep.subr.mxu0 0.0
    %697 = vmatpush1.msra.mxu0 0.0
    %698 = vmatprep.subr.mxu0 0.0
    %699 = vmatpush1.msra.mxu0 0.0
    %700 = vmatprep.subr.mxu0 0.0
    %701 = vmatpush1.msra.mxu0 0.0
    %702 = vmatprep.subr.mxu0 0.0
    %703 = vmatpush1.msra.mxu0 0.0
    %704 = vmatprep.subr.mxu0 0.0
    %705 = vmatpush1.msra.mxu0 0.0
    %706 = vmatprep.subr.mxu0 0.0
    %707 = vmatpush1.msra.mxu0 0.0
    %708 = vmatprep.subr.mxu0 0.0
    %709 = vmatpush1.msra.mxu0 %v322
    %710 = vmatprep.subr.mxu0 0.0
    %711 = vmatpush2.msra.mxu0 0.0
    %712 = vmatprep.subr.mxu0 0.0
    %713 = vmatpush2.msra.mxu0 0.0
    %714 = vmatprep.subr.mxu0 0.0
    %715 = vmatpush2.msra.mxu0 0.0
    %716 = vmatprep.subr.mxu0 0.0
    %717 = vmatpush2.msra.mxu0 0.0
    %718 = vmatprep.subr.mxu0 0.0
    %719 = vmatpush2.msra.mxu0 0.0
    %720 = vmatprep.subr.mxu0 0.0
    %721 = vmatpush2.msra.mxu0 0.0
    %722 = vmatprep.subr.mxu0 0.0
    %723 = vmatpush2.msra.mxu0 0.0
    %724 = vmatprep.subr.mxu0 0.0
    %725 = vmatpush2.msra.mxu0 0.0
    %726 = vmatprep.subr.mxu0 0.0
    %727 = vmatpush2.msra.mxu0 0.0
    %728 = vmatprep.subr.mxu0 0.0
    %729 = vmatpush2.msra.mxu0 0.0
    %730 = vmatprep.subr.mxu0 0.0
    %731 = vmatpush2.msra.mxu0 0.0
    %732 = vmatprep.subr.mxu0 0.0
    %733 = vmatpush2.msra.mxu0 0.0
    %734 = vmatprep.subr.mxu0 0.0
    %735 = vmatpush2.msra.mxu0 0.0
    %736 = vmatprep.subr.mxu0 0.0
    %737 = vmatpush2.msra.mxu0 0.0
    %738 = vmatprep.subr.mxu0 0.0
    %739 = vmatpush2.msra.mxu0 0.0
    %740 = vmatprep.subr.mxu0 0.0
    %741 = vmatpush2.msra.mxu0 0.0
    %742 = vmatprep.mubr.f32.mxu0 0.0
    %743 = vmatmul.mubr.f32.gmra.mxu0 %v655
    %v744 = vpop.f32.mrf.mxu0
    %v745 = vadd.f32 %v616, %v744
    %v746 = vpop.f32.mrf.mxu0
    %747 = vmatprep.mubr.f32.mxu0 0.0
    %748 = vmatmul.mubr.f32.gmra.mxu0 %v658
    %v749 = vpop.f32.mrf.mxu0
    %v750 = vadd.f32 %v621, %v749
    %v751 = vpop.f32.mrf.mxu0
    %752 = vmatprep.mubr.f32.mxu0 0.0
    %753 = vmatmul.mubr.f32.gmra.mxu0 %v661
    %v754 = vpop.f32.mrf.mxu0
    %v755 = vadd.f32 %v626, %v754
    %v756 = vpop.f32.mrf.mxu0
    %757 = vmatprep.mubr.f32.mxu0 0.0
    %758 = vmatmul.mubr.f32.gmra.mxu0 %v664
    %v759 = vpop.f32.mrf.mxu0
    %v760 = vadd.f32 %v631, %v759
    %v761 = vpop.f32.mrf.mxu0
    %762 = vmatprep.mubr.f32.mxu0 0.0
    %763 = vmatmul.mubr.f32.gmra.mxu0 %v667
    %v764 = vpop.f32.mrf.mxu0
    %v765 = vadd.f32 %v636, %v764
    %v766 = vpop.f32.mrf.mxu0
    %767 = vmatprep.mubr.f32.mxu0 0.0
    %768 = vmatmul.mubr.f32.gmra.mxu0 %v670
    %v769 = vpop.f32.mrf.mxu0
    %v770 = vadd.f32 %v641, %v769
    %v771 = vpop.f32.mrf.mxu0
    %772 = vmatprep.mubr.f32.mxu0 0.0
    %773 = vmatmul.mubr.f32.gmra.mxu0 %v673
    %v774 = vpop.f32.mrf.mxu0
    %v775 = vadd.f32 %v646, %v774
    %v776 = vpop.f32.mrf.mxu0
    %777 = vmatprep.mubr.f32.mxu0 0.0
    %778 = vmatmul.mubr.f32.gmra.mxu0 %v676
    %v779 = vpop.f32.mrf.mxu0
    %v780 = vadd.f32 %v651, %v779
    %v781 = vpop.f32.mrf.mxu0
    %782 = vdwg.mxu0
    %v783 = vadd.f32 %v745, %v487
    %v784 = vadd.f32 %v750, %v492
    %v785 = vadd.f32 %v755, %v497
    %v786 = vadd.f32 %v760, %v502
    %v787 = vadd.f32 %v765, %v507
    %v788 = vadd.f32 %v770, %v512
    %v789 = vadd.f32 %v775, %v517
    %v790 = vadd.f32 %v780, %v522
    %v791 = vlaneseq
    %v792 = vshrl.u32 %v791, 7
    %v793 = vsub.s32 0, %v792
    %v794 = vrot.slane %v40, %v793
    %v795 = vadd.f32 %v783, %v794
    %v796 = vadd.f32 %v784, %v794
    %v797 = vadd.f32 %v785, %v794
    %v798 = vadd.f32 %v786, %v794
    %v799 = vadd.f32 %v787, %v794
    %v800 = vadd.f32 %v788, %v794
    %v801 = vadd.f32 %v789, %v794
    %v802 = vadd.f32 %v790, %v794
    %vm803 = vcmp.ge.f32.partialorder %v795, 0.0
    %vm804 = vcmp.ge.f32.partialorder %v796, 0.0
    %vm805 = vcmp.ge.f32.partialorder %v797, 0.0
    %vm806 = vcmp.ge.f32.partialorder %v798, 0.0
    %vm807 = vcmp.ge.f32.partialorder %v799, 0.0
    %vm808 = vcmp.ge.f32.partialorder %v800, 0.0
    %vm809 = vcmp.ge.f32.partialorder %v801, 0.0
    %vm810 = vcmp.ge.f32.partialorder %v802, 0.0
    %v811 = vmul.f32 %v795, 0.01
    %v812 = vmul.f32 %v796, 0.01
    %v813 = vmul.f32 %v797, 0.01
    %v814 = vmul.f32 %v798, 0.01
    %v815 = vmul.f32 %v799, 0.01
    %v816 = vmul.f32 %v800, 0.01
    %v817 = vmul.f32 %v801, 0.01
    %v818 = vmul.f32 %v802, 0.01
    %v819 = vsel %vm803, %v795, %v811
    %v820 = vsel %vm804, %v796, %v812
    %v821 = vsel %vm805, %v797, %v813
    %v822 = vsel %vm806, %v798, %v814
    %v823 = vsel %vm807, %v799, %v815
    %v824 = vsel %vm808, %v800, %v816
    %v825 = vsel %vm809, %v801, %v817
    %v826 = vsel %vm810, %v802, %v818
    %vm827 = vcmask 261120
    %v828 = vsel %vm827, %v819, 0.0
    %v829 = vsel %vm827, %v820, 0.0
    %v830 = vadd.f32 %v828, %v829
    %v831 = vsel %vm827, %v821, 0.0
    %v832 = vadd.f32 %v830, %v831
    %v833 = vsel %vm827, %v822, 0.0
    %v834 = vadd.f32 %v832, %v833
    %v835 = vsel %vm827, %v823, 0.0
    %v836 = vadd.f32 %v834, %v835
    %v837 = vsel %vm827, %v824, 0.0
    %v838 = vadd.f32 %v836, %v837
    %v839 = vsel %vm827, %v825, 0.0
    %v840 = vadd.f32 %v838, %v839
    %v841 = vsel %vm827, %v826, 0.0
    %v842 = vadd.f32 %v840, %v841
    %v843 = vrot.slane %v842, 4
    %v844 = vadd.f32 %v842, %v843
    %v845 = vrot.slane %v844, 2
    %v846 = vadd.f32 %v844, %v845
    %v847 = vrot.slane %v846, 1
    %v848 = vadd.f32 %v846, %v847
    %v849 = vrcp.pop 64.0
    %v850 = vmul.f32 %v848, %v849
    %v851 = vmul.f32 %v819, %v819
    %v852 = vmul.f32 %v820, %v820
    %v853 = vmul.f32 %v821, %v821
    %v854 = vmul.f32 %v822, %v822
    %v855 = vmul.f32 %v823, %v823
    %v856 = vmul.f32 %v824, %v824
    %v857 = vmul.f32 %v825, %v825
    %v858 = vmul.f32 %v826, %v826
    %v859 = vsel %vm827, %v851, 0.0
    %v860 = vsel %vm827, %v852, 0.0
    %v861 = vadd.f32 %v859, %v860
    %v862 = vsel %vm827, %v853, 0.0
    %v863 = vadd.f32 %v861, %v862
    %v864 = vsel %vm827, %v854, 0.0
    %v865 = vadd.f32 %v863, %v864
    %v866 = vsel %vm827, %v855, 0.0
    %v867 = vadd.f32 %v865, %v866
    %v868 = vsel %vm827, %v856, 0.0
    %v869 = vadd.f32 %v867, %v868
    %v870 = vsel %vm827, %v857, 0.0
    %v871 = vadd.f32 %v869, %v870
    %v872 = vsel %vm827, %v858, 0.0
    %v873 = vadd.f32 %v871, %v872
    %v874 = vrot.slane %v873, 4
    %v875 = vadd.f32 %v873, %v874
    %v876 = vrot.slane %v875, 2
    %v877 = vadd.f32 %v875, %v876
    %v878 = vrot.slane %v877, 1
    %v879 = vadd.f32 %v877, %v878
    %v880 = vmul.f32 %v879, %v849
    %v881 = vmul.f32 %v850, %v850
    %v882 = vsub.f32 %v880, %v881
    %v883 = vmax.f32 %v882, 0.0
    %v884 = vsub.f32 %v819, %v850
    %v885 = vsub.f32 %v820, %v850
    %v886 = vsub.f32 %v821, %v850
    %v887 = vsub.f32 %v822, %v850
    %v888 = vsub.f32 %v823, %v850
    %v889 = vsub.f32 %v824, %v850
    %v890 = vsub.f32 %v825, %v850
    %v891 = vsub.f32 %v826, %v850
    %v892 = vlaneseq
    %v893 = vshrl.u32 %v892, 7
    %v894 = vsub.s32 0, %v893
    %v895 = vrot.slane %v41, %v894
    %v896 = vmul.f32 %v895, %v884
    %v897 = vmul.f32 %v895, %v885
    %v898 = vmul.f32 %v895, %v886
    %v899 = vmul.f32 %v895, %v887
    %v900 = vmul.f32 %v895, %v888
    %v901 = vmul.f32 %v895, %v889
    %v902 = vmul.f32 %v895, %v890
    %v903 = vmul.f32 %v895, %v891
    %v904 = vadd.f32 %v883, 1e-05
    %v905 = vrsqrt.pop %v904
    %v906 = vmul.f32 %v896, %v905
    %v907 = vmul.f32 %v897, %v905
    %v908 = vmul.f32 %v898, %v905
    %v909 = vmul.f32 %v899, %v905
    %v910 = vmul.f32 %v900, %v905
    %v911 = vmul.f32 %v901, %v905
    %v912 = vmul.f32 %v902, %v905
    %v913 = vmul.f32 %v903, %v905
    %v914 = vlaneseq
    %v915 = vshrl.u32 %v914, 7
    %v916 = vsub.s32 0, %v915
    %v917 = vrot.slane %v42, %v916
    %v918 = vadd.f32 %v906, %v917
    %v919 = vadd.f32 %v907, %v917
    %v920 = vadd.f32 %v908, %v917
    %v921 = vadd.f32 %v909, %v917
    %v922 = vadd.f32 %v910, %v917
    %v923 = vadd.f32 %v911, %v917
    %v924 = vadd.f32 %v912, %v917
    %v925 = vadd.f32 %v913, %v917
    %v926 = vlaneseq
    %v927 = vshrl.u32 %v926, 7
    %v928 = vsub.s32 0, %v927
    %v929 = vrot.slane %v43, %v928
    %v931 = vsel %vm827, %v918, 0
    %v934 = vsel %vm827, %v919, 0
    %v937 = vsel %vm827, %v920, 0
    %v940 = vsel %vm827, %v921, 0
    %v943 = vsel %vm827, %v922, 0
    %v946 = vsel %vm827, %v923, 0
    %v949 = vsel %vm827, %v924, 0
    %v952 = vsel %vm827, %v925, 0
    %954 = vmatprep.subr.mxu0 0.0
    %955 = vmatpush1.msra.mxu0 0.0
    %956 = vmatprep.subr.mxu0 0.0
    %957 = vmatpush1.msra.mxu0 0.0
    %958 = vmatprep.subr.mxu0 0.0
    %959 = vmatpush1.msra.mxu0 0.0
    %960 = vmatprep.subr.mxu0 0.0
    %961 = vmatpush1.msra.mxu0 0.0
    %962 = vmatprep.subr.mxu0 0.0
    %963 = vmatpush1.msra.mxu0 0.0
    %964 = vmatprep.subr.mxu0 0.0
    %965 = vmatpush1.msra.mxu0 0.0
    %966 = vmatprep.subr.mxu0 0.0
    %967 = vmatpush1.msra.mxu0 0.0
    %968 = vmatprep.subr.mxu0 0.0
    %969 = vmatpush1.msra.mxu0 0.0
    %970 = vmatprep.subr.mxu0 0.0
    %971 = vmatpush1.msra.mxu0 0.0
    %972 = vmatprep.subr.mxu0 0.0
    %973 = vmatpush1.msra.mxu0 0.0
    %974 = vmatprep.subr.mxu0 0.0
    %975 = vmatpush1.msra.mxu0 0.0
    %976 = vmatprep.subr.mxu0 0.0
    %977 = vmatpush1.msra.mxu0 0.0
    %978 = vmatprep.subr.mxu0 0.0
    %979 = vmatpush1.msra.mxu0 %v37
    %980 = vmatprep.subr.mxu0 0.0
    %981 = vmatpush1.msra.mxu0 %v36
    %982 = vmatprep.subr.mxu0 0.0
    %983 = vmatpush1.msra.mxu0 %v35
    %984 = vmatprep.subr.mxu0 0.0
    %985 = vmatpush1.msra.mxu0 %v34
    %986 = vmatprep.subr.mxu0 0.0
    %987 = vmatpush2.msra.mxu0 0.0
    %988 = vmatprep.subr.mxu0 0.0
    %989 = vmatpush2.msra.mxu0 0.0
    %990 = vmatprep.subr.mxu0 0.0
    %991 = vmatpush2.msra.mxu0 0.0
    %992 = vmatprep.subr.mxu0 0.0
    %993 = vmatpush2.msra.mxu0 0.0
    %994 = vmatprep.subr.mxu0 0.0
    %995 = vmatpush2.msra.mxu0 0.0
    %996 = vmatprep.subr.mxu0 0.0
    %997 = vmatpush2.msra.mxu0 0.0
    %998 = vmatprep.subr.mxu0 0.0
    %999 = vmatpush2.msra.mxu0 0.0
    %1000 = vmatprep.subr.mxu0 0.0
    %1001 = vmatpush2.msra.mxu0 0.0
    %1002 = vmatprep.subr.mxu0 0.0
    %1003 = vmatpush2.msra.mxu0 0.0
    %1004 = vmatprep.subr.mxu0 0.0
    %1005 = vmatpush2.msra.mxu0 0.0
    %1006 = vmatprep.subr.mxu0 0.0
    %1007 = vmatpush2.msra.mxu0 0.0
    %1008 = vmatprep.subr.mxu0 0.0
    %1009 = vmatpush2.msra.mxu0 0.0
    %1010 = vmatprep.subr.mxu0 0.0
    %1011 = vmatpush2.msra.mxu0 0.0
    %1012 = vmatprep.subr.mxu0 0.0
    %1013 = vmatpush2.msra.mxu0 0.0
    %1014 = vmatprep.subr.mxu0 0.0
    %1015 = vmatpush2.msra.mxu0 0.0
    %1016 = vmatprep.subr.mxu0 0.0
    %1017 = vmatpush2.msra.mxu0 0.0
    %1018 = vmatprep.mubr.f32.mxu0 0.0
    %1019 = vmatmul.mubr.f32.gmra.mxu0 %v931
    %v1020 = vpop.f32.mrf.mxu0
    %v1021 = vadd.f32 %v929, %v1020
    %v1022 = vpop.f32.mrf.mxu0
    %1023 = vmatprep.mubr.f32.mxu0 0.0
    %1024 = vmatmul.mubr.f32.gmra.mxu0 %v934
    %v1025 = vpop.f32.mrf.mxu0
    %v1026 = vadd.f32 %v929, %v1025
    %v1027 = vpop.f32.mrf.mxu0
    %1028 = vmatprep.mubr.f32.mxu0 0.0
    %1029 = vmatmul.mubr.f32.gmra.mxu0 %v937
    %v1030 = vpop.f32.mrf.mxu0
    %v1031 = vadd.f32 %v929, %v1030
    %v1032 = vpop.f32.mrf.mxu0
    %1033 = vmatprep.mubr.f32.mxu0 0.0
    %1034 = vmatmul.mubr.f32.gmra.mxu0 %v940
    %v1035 = vpop.f32.mrf.mxu0
    %v1036 = vadd.f32 %v929, %v1035
    %v1037 = vpop.f32.mrf.mxu0
    %1038 = vmatprep.mubr.f32.mxu0 0.0
    %1039 = vmatmul.mubr.f32.gmra.mxu0 %v943
    %v1040 = vpop.f32.mrf.mxu0
    %v1041 = vadd.f32 %v929, %v1040
    %v1042 = vpop.f32.mrf.mxu0
    %1043 = vmatprep.mubr.f32.mxu0 0.0
    %1044 = vmatmul.mubr.f32.gmra.mxu0 %v946
    %v1045 = vpop.f32.mrf.mxu0
    %v1046 = vadd.f32 %v929, %v1045
    %v1047 = vpop.f32.mrf.mxu0
    %1048 = vmatprep.mubr.f32.mxu0 0.0
    %1049 = vmatmul.mubr.f32.gmra.mxu0 %v949
    %v1050 = vpop.f32.mrf.mxu0
    %v1051 = vadd.f32 %v929, %v1050
    %v1052 = vpop.f32.mrf.mxu0
    %1053 = vmatprep.mubr.f32.mxu0 0.0
    %1054 = vmatmul.mubr.f32.gmra.mxu0 %v952
    %v1055 = vpop.f32.mrf.mxu0
    %v1056 = vadd.f32 %v929, %v1055
    %v1057 = vpop.f32.mrf.mxu0
    %1058 = vdwg.mxu0
    %v1059 = vlaneseq
    %v1060 = vshrl.u32 %v1059, 7
    %v1061 = vsub.s32 0, %v1060
    %v1062 = vrot.slane %v44, %v1061
    %v1064 = vsel %vm251, %v1021, 0
    %v1067 = vsel %vm251, %v1026, 0
    %v1070 = vsel %vm251, %v1031, 0
    %v1073 = vsel %vm251, %v1036, 0
    %v1076 = vsel %vm251, %v1041, 0
    %v1079 = vsel %vm251, %v1046, 0
    %v1082 = vsel %vm251, %v1051, 0
    %v1085 = vsel %vm251, %v1056, 0
    %1087 = vmatprep.subr.mxu0 0.0
    %1088 = vmatpush1.msra.mxu0 0.0
    %1089 = vmatprep.subr.mxu0 0.0
    %1090 = vmatpush1.msra.mxu0 0.0
    %1091 = vmatprep.subr.mxu0 0.0
    %1092 = vmatpush1.msra.mxu0 0.0
    %1093 = vmatprep.subr.mxu0 0.0
    %1094 = vmatpush1.msra.mxu0 0.0
    %1095 = vmatprep.subr.mxu0 0.0
    %1096 = vmatpush1.msra.mxu0 0.0
    %1097 = vmatprep.subr.mxu0 0.0
    %1098 = vmatpush1.msra.mxu0 0.0
    %1099 = vmatprep.subr.mxu0 0.0
    %1100 = vmatpush1.msra.mxu0 0.0
    %1101 = vmatprep.subr.mxu0 0.0
    %1102 = vmatpush1.msra.mxu0 0.0
    %1103 = vmatprep.subr.mxu0 0.0
    %1104 = vmatpush1.msra.mxu0 0.0
    %1105 = vmatprep.subr.mxu0 0.0
    %1106 = vmatpush1.msra.mxu0 0.0
    %1107 = vmatprep.subr.mxu0 0.0
    %1108 = vmatpush1.msra.mxu0 0.0
    %1109 = vmatprep.subr.mxu0 0.0
    %1110 = vmatpush1.msra.mxu0 0.0
    %1111 = vmatprep.subr.mxu0 0.0
    %1112 = vmatpush1.msra.mxu0 0.0
    %1113 = vmatprep.subr.mxu0 0.0
    %1114 = vmatpush1.msra.mxu0 0.0
    %1115 = vmatprep.subr.mxu0 0.0
    %1116 = vmatpush1.msra.mxu0 %v39
    %1117 = vmatprep.subr.mxu0 0.0
    %1118 = vmatpush1.msra.mxu0 %v38
    %1119 = vmatprep.subr.mxu0 0.0
    %1120 = vmatpush2.msra.mxu0 0.0
    %1121 = vmatprep.subr.mxu0 0.0
    %1122 = vmatpush2.msra.mxu0 0.0
    %1123 = vmatprep.subr.mxu0 0.0
    %1124 = vmatpush2.msra.mxu0 0.0
    %1125 = vmatprep.subr.mxu0 0.0
    %1126 = vmatpush2.msra.mxu0 0.0
    %1127 = vmatprep.subr.mxu0 0.0
    %1128 = vmatpush2.msra.mxu0 0.0
    %1129 = vmatprep.subr.mxu0 0.0
    %1130 = vmatpush2.msra.mxu0 0.0
    %1131 = vmatprep.subr.mxu0 0.0
    %1132 = vmatpush2.msra.mxu0 0.0
    %1133 = vmatprep.subr.mxu0 0.0
    %1134 = vmatpush2.msra.mxu0 0.0
    %1135 = vmatprep.subr.mxu0 0.0
    %1136 = vmatpush2.msra.mxu0 0.0
    %1137 = vmatprep.subr.mxu0 0.0
    %1138 = vmatpush2.msra.mxu0 0.0
    %1139 = vmatprep.subr.mxu0 0.0
    %1140 = vmatpush2.msra.mxu0 0.0
    %1141 = vmatprep.subr.mxu0 0.0
    %1142 = vmatpush2.msra.mxu0 0.0
    %1143 = vmatprep.subr.mxu0 0.0
    %1144 = vmatpush2.msra.mxu0 0.0
    %1145 = vmatprep.subr.mxu0 0.0
    %1146 = vmatpush2.msra.mxu0 0.0
    %1147 = vmatprep.subr.mxu0 0.0
    %1148 = vmatpush2.msra.mxu0 0.0
    %1149 = vmatprep.subr.mxu0 0.0
    %1150 = vmatpush2.msra.mxu0 0.0
    %1151 = vmatprep.mubr.f32.mxu0 0.0
    %1152 = vmatmul.mubr.f32.gmra.mxu0 %v1064
    %v1153 = vpop.f32.mrf.mxu0
    %v1154 = vadd.f32 %v1062, %v1153
    %v1155 = vpop.f32.mrf.mxu0
    %1156 = vmatprep.mubr.f32.mxu0 0.0
    %1157 = vmatmul.mubr.f32.gmra.mxu0 %v1067
    %v1158 = vpop.f32.mrf.mxu0
    %v1159 = vadd.f32 %v1062, %v1158
    %v1160 = vpop.f32.mrf.mxu0
    %1161 = vmatprep.mubr.f32.mxu0 0.0
    %1162 = vmatmul.mubr.f32.gmra.mxu0 %v1070
    %v1163 = vpop.f32.mrf.mxu0
    %v1164 = vadd.f32 %v1062, %v1163
    %v1165 = vpop.f32.mrf.mxu0
    %1166 = vmatprep.mubr.f32.mxu0 0.0
    %1167 = vmatmul.mubr.f32.gmra.mxu0 %v1073
    %v1168 = vpop.f32.mrf.mxu0
    %v1169 = vadd.f32 %v1062, %v1168
    %v1170 = vpop.f32.mrf.mxu0
    %1171 = vmatprep.mubr.f32.mxu0 0.0
    %1172 = vmatmul.mubr.f32.gmra.mxu0 %v1076
    %v1173 = vpop.f32.mrf.mxu0
    %v1174 = vadd.f32 %v1062, %v1173
    %v1175 = vpop.f32.mrf.mxu0
    %1176 = vmatprep.mubr.f32.mxu0 0.0
    %1177 = vmatmul.mubr.f32.gmra.mxu0 %v1079
    %v1178 = vpop.f32.mrf.mxu0
    %v1179 = vadd.f32 %v1062, %v1178
    %v1180 = vpop.f32.mrf.mxu0
    %1181 = vmatprep.mubr.f32.mxu0 0.0
    %1182 = vmatmul.mubr.f32.gmra.mxu0 %v1082
    %v1183 = vpop.f32.mrf.mxu0
    %v1184 = vadd.f32 %v1062, %v1183
    %v1185 = vpop.f32.mrf.mxu0
    %1186 = vmatprep.mubr.f32.mxu0 0.0
    %1187 = vmatmul.mubr.f32.gmra.mxu0 %v1085
    %v1188 = vpop.f32.mrf.mxu0
    %v1189 = vadd.f32 %v1062, %v1188
    %v1190 = vpop.f32.mrf.mxu0
    %1191 = vdwg.mxu0
    %1200 = vrot.lane.b32.xlu0 %v1154, 15
    %v1201 = vpop.permute.xlu0 %1200
    %1202 = vrot.lane.b32.xlu0 %v1159, 15
    %v1203 = vpop.permute.xlu0 %1202
    %1204 = vrot.lane.b32.xlu0 %v1164, 15
    %v1205 = vpop.permute.xlu0 %1204
    %1206 = vrot.lane.b32.xlu0 %v1169, 15
    %v1207 = vpop.permute.xlu0 %1206
    %1208 = vrot.lane.b32.xlu0 %v1174, 15
    %v1209 = vpop.permute.xlu0 %1208
    %1210 = vrot.lane.b32.xlu0 %v1179, 15
    %v1211 = vpop.permute.xlu0 %1210
    %1212 = vrot.lane.b32.xlu0 %v1184, 15
    %v1213 = vpop.permute.xlu0 %1212
    %1214 = vrot.lane.b32.xlu0 %v1189, 15
    %v1215 = vpop.permute.xlu0 %1214
    %v1224 = vsel %vm251, %v1021, %v1201
    %v1225 = vsel %vm251, %v1026, %v1203
    %v1226 = vsel %vm251, %v1031, %v1205
    %v1227 = vsel %vm251, %v1036, %v1207
    %v1228 = vsel %vm251, %v1041, %v1209
    %v1229 = vsel %vm251, %v1046, %v1211
    %v1230 = vsel %vm251, %v1051, %v1213
    %v1231 = vsel %vm251, %v1056, %v1215
    %vm1232 = vcmask 195584
    %1233 = vst.msk [vmem:[%s4] sm:$0xff] %vm1232, %v1224
    %1234 = vst.msk [vmem:[%s4 + $0x8] sm:$0xff] %vm1232, %v1225
    %1235 = vst.msk [vmem:[%s4 + $0x10] sm:$0xff] %vm1232, %v1226
    %1236 = vst.msk [vmem:[%s4 + $0x18] sm:$0xff] %vm1232, %v1227
    %1237 = vst.msk [vmem:[%s4 + $0x20] sm:$0xff] %vm1232, %v1228
    %1238 = vst.msk [vmem:[%s4 + $0x28] sm:$0xff] %vm1232, %v1229
    %1239 = vst.msk [vmem:[%s4 + $0x30] sm:$0xff] %vm1232, %v1230
    %1240 = vst.msk [vmem:[%s4 + $0x38] sm:$0xff] %vm1232, %v1231
    %1241 = vset.pattern.permute.xlu0 0
    %1242 = vperm.xlu0 %1241, %v1154
    %v1243 = vpop.permute.xlu0 %1242
    %1245 = vset.pattern.permute.xlu0 0
    %1246 = vperm.xlu0 %1245, %v1159
    %v1247 = vpop.permute.xlu0 %1246
    %1249 = vset.pattern.permute.xlu0 0
    %1250 = vperm.xlu0 %1249, %v1164
    %v1251 = vpop.permute.xlu0 %1250
    %1253 = vset.pattern.permute.xlu0 0
    %1254 = vperm.xlu0 %1253, %v1169
    %v1255 = vpop.permute.xlu0 %1254
    %1257 = vset.pattern.permute.xlu0 0
    %1258 = vperm.xlu0 %1257, %v1174
    %v1259 = vpop.permute.xlu0 %1258
    %1261 = vset.pattern.permute.xlu0 0
    %1262 = vperm.xlu0 %1261, %v1179
    %v1263 = vpop.permute.xlu0 %1262
    %1265 = vset.pattern.permute.xlu0 0
    %1266 = vperm.xlu0 %1265, %v1184
    %v1267 = vpop.permute.xlu0 %1266
    %1269 = vset.pattern.permute.xlu0 0
    %1270 = vperm.xlu0 %1269, %v1189
    %v1271 = vpop.permute.xlu0 %1270
    %v1273 = vmul.f32 %v1243, %v219
    %v1274 = vmul.f32 %v1247, %v220
    %v1275 = vmul.f32 %v1251, %v221
    %v1276 = vmul.f32 %v1255, %v222
    %v1277 = vmul.f32 %v1259, %v223
    %v1278 = vmul.f32 %v1263, %v224
    %v1279 = vmul.f32 %v1267, %v225
    %v1280 = vmul.f32 %v1271, %v226
    %vm1281 = vcmask 523264
    %v1283 = vsel %vm1281, %v233, 0
    %1285 = vmatprep.subr.mxu0 0.0
    %1286 = vmatpush1.msra.mxu0 0.0
    %1287 = vmatprep.subr.mxu0 0.0
    %1288 = vmatpush1.msra.mxu0 0.0
    %1289 = vmatprep.subr.mxu0 0.0
    %1290 = vmatpush1.msra.mxu0 0.0
    %1291 = vmatprep.subr.mxu0 0.0
    %1292 = vmatpush1.msra.mxu0 0.0
    %1293 = vmatprep.subr.mxu0 0.0
    %1294 = vmatpush1.msra.mxu0 0.0
    %1295 = vmatprep.subr.mxu0 0.0
    %1296 = vmatpush1.msra.mxu0 0.0
    %1297 = vmatprep.subr.mxu0 0.0
    %1298 = vmatpush1.msra.mxu0 0.0
    %1299 = vmatprep.subr.mxu0 0.0
    %1300 = vmatpush1.msra.mxu0 0.0
    %1301 = vmatprep.subr.mxu0 0.0
    %1302 = vmatpush1.msra.mxu0 %v1280
    %1303 = vmatprep.subr.mxu0 0.0
    %1304 = vmatpush1.msra.mxu0 %v1279
    %1305 = vmatprep.subr.mxu0 0.0
    %1306 = vmatpush1.msra.mxu0 %v1278
    %1307 = vmatprep.subr.mxu0 0.0
    %1308 = vmatpush1.msra.mxu0 %v1277
    %1309 = vmatprep.subr.mxu0 0.0
    %1310 = vmatpush1.msra.mxu0 %v1276
    %1311 = vmatprep.subr.mxu0 0.0
    %1312 = vmatpush1.msra.mxu0 %v1275
    %1313 = vmatprep.subr.mxu0 0.0
    %1314 = vmatpush1.msra.mxu0 %v1274
    %1315 = vmatprep.subr.mxu0 0.0
    %1316 = vmatpush1.msra.mxu0 %v1273
    %1317 = vmatprep.subr.mxu0 0.0
    %1318 = vmatpush2.msra.mxu0 0.0
    %1319 = vmatprep.subr.mxu0 0.0
    %1320 = vmatpush2.msra.mxu0 0.0
    %1321 = vmatprep.subr.mxu0 0.0
    %1322 = vmatpush2.msra.mxu0 0.0
    %1323 = vmatprep.subr.mxu0 0.0
    %1324 = vmatpush2.msra.mxu0 0.0
    %1325 = vmatprep.subr.mxu0 0.0
    %1326 = vmatpush2.msra.mxu0 0.0
    %1327 = vmatprep.subr.mxu0 0.0
    %1328 = vmatpush2.msra.mxu0 0.0
    %1329 = vmatprep.subr.mxu0 0.0
    %1330 = vmatpush2.msra.mxu0 0.0
    %1331 = vmatprep.subr.mxu0 0.0
    %1332 = vmatpush2.msra.mxu0 0.0
    %1333 = vmatprep.subr.mxu0 0.0
    %1334 = vmatpush2.msra.mxu0 0.0
    %1335 = vmatprep.subr.mxu0 0.0
    %1336 = vmatpush2.msra.mxu0 0.0
    %1337 = vmatprep.subr.mxu0 0.0
    %1338 = vmatpush2.msra.mxu0 0.0
    %1339 = vmatprep.subr.mxu0 0.0
    %1340 = vmatpush2.msra.mxu0 0.0
    %1341 = vmatprep.subr.mxu0 0.0
    %1342 = vmatpush2.msra.mxu0 0.0
    %1343 = vmatprep.subr.mxu0 0.0
    %1344 = vmatpush2.msra.mxu0 0.0
    %1345 = vmatprep.subr.mxu0 0.0
    %1346 = vmatpush2.msra.mxu0 0.0
    %1347 = vmatprep.subr.mxu0 0.0
    %1348 = vmatpush2.msra.mxu0 0.0
    %1349 = vmatprep.mubr.f32.mxu0 0.0
    %1350 = vmatmul.mubr.f32.gmra.mxu0 %v1283
    %v1351 = vpop.f32.mrf.mxu0
    %v1352 = vadd.f32 0.0, %v1351
    %v1353 = vpop.f32.mrf.mxu0
    %1354 = vdwg.mxu0
    %v1355 = vsel %vm395, %v1352, -inf
    %1356 = vmax.xlane.f32.xlu0 %v1355
    %v1357 = vpop.xlane.xlu0 %1356
    %v1358 = vsub.f32 %v1352, %v1357
    %v1359 = vmul.f32 %v1358, 1.442695
    %v1360 = vpow.pop %v1359
    %v1361 = vsel %vm395, %v1360, 0.0
    %1362 = vadd.xlane.f32.xlu0 %v1361
    %v1363 = vpop.xlane.xlu0 %1362
    %v1364 = vrcp.pop %v1363
    %v1365 = vmul.f32 %v1360, %v1364
    %v1367 = vsel %vm395, %v1365, 0
    %1369 = vmatprep.subr.mxu0 0.0
    %1370 = vmatpush1.msra.mxu0 0.0
    %1371 = vmatprep.subr.mxu0 0.0
    %1372 = vmatpush1.msra.mxu0 0.0
    %1373 = vmatprep.subr.mxu0 0.0
    %1374 = vmatpush1.msra.mxu0 0.0
    %1375 = vmatprep.subr.mxu0 0.0
    %1376 = vmatpush1.msra.mxu0 0.0
    %1377 = vmatprep.subr.mxu0 0.0
    %1378 = vmatpush1.msra.mxu0 0.0
    %1379 = vmatprep.subr.mxu0 0.0
    %1380 = vmatpush1.msra.mxu0 0.0
    %1381 = vmatprep.subr.mxu0 0.0
    %1382 = vmatpush1.msra.mxu0 0.0
    %1383 = vmatprep.subr.mxu0 0.0
    %1384 = vmatpush1.msra.mxu0 0.0
    %1385 = vmatprep.subr.mxu0 0.0
    %1386 = vmatpush1.msra.mxu0 0.0
    %1387 = vmatprep.subr.mxu0 0.0
    %1388 = vmatpush1.msra.mxu0 0.0
    %1389 = vmatprep.subr.mxu0 0.0
    %1390 = vmatpush1.msra.mxu0 0.0
    %1391 = vmatprep.subr.mxu0 0.0
    %1392 = vmatpush1.msra.mxu0 0.0
    %1393 = vmatprep.subr.mxu0 0.0
    %1394 = vmatpush1.msra.mxu0 0.0
    %1395 = vmatprep.subr.mxu0 0.0
    %1396 = vmatpush1.msra.mxu0 0.0
    %1397 = vmatprep.subr.mxu0 0.0
    %1398 = vmatpush1.msra.mxu0 0.0
    %1399 = vmatprep.subr.mxu0 0.0
    %1400 = vmatpush1.msra.mxu0 %v250
    %1401 = vmatprep.subr.mxu0 0.0
    %1402 = vmatpush2.msra.mxu0 0.0
    %1403 = vmatprep.subr.mxu0 0.0
    %1404 = vmatpush2.msra.mxu0 0.0
    %1405 = vmatprep.subr.mxu0 0.0
    %1406 = vmatpush2.msra.mxu0 0.0
    %1407 = vmatprep.subr.mxu0 0.0
    %1408 = vmatpush2.msra.mxu0 0.0
    %1409 = vmatprep.subr.mxu0 0.0
    %1410 = vmatpush2.msra.mxu0 0.0
    %1411 = vmatprep.subr.mxu0 0.0
    %1412 = vmatpush2.msra.mxu0 0.0
    %1413 = vmatprep.subr.mxu0 0.0
    %1414 = vmatpush2.msra.mxu0 0.0
    %1415 = vmatprep.subr.mxu0 0.0
    %1416 = vmatpush2.msra.mxu0 0.0
    %1417 = vmatprep.subr.mxu0 0.0
    %1418 = vmatpush2.msra.mxu0 0.0
    %1419 = vmatprep.subr.mxu0 0.0
    %1420 = vmatpush2.msra.mxu0 0.0
    %1421 = vmatprep.subr.mxu0 0.0
    %1422 = vmatpush2.msra.mxu0 0.0
    %1423 = vmatprep.subr.mxu0 0.0
    %1424 = vmatpush2.msra.mxu0 0.0
    %1425 = vmatprep.subr.mxu0 0.0
    %1426 = vmatpush2.msra.mxu0 0.0
    %1427 = vmatprep.subr.mxu0 0.0
    %1428 = vmatpush2.msra.mxu0 0.0
    %1429 = vmatprep.subr.mxu0 0.0
    %1430 = vmatpush2.msra.mxu0 0.0
    %1431 = vmatprep.subr.mxu0 0.0
    %1432 = vmatpush2.msra.mxu0 0.0
    %1433 = vmatprep.mubr.f32.mxu0 0.0
    %1434 = vmatmul.mubr.f32.gmra.mxu0 %v1367
    %v1435 = vpop.f32.mrf.mxu0
    %v1436 = vadd.f32 0.0, %v1435
    %v1437 = vpop.f32.mrf.mxu0
    %1438 = vdwg.mxu0
    %v1439 = vmul.f32 %v1436, %v233
    %v1441 = vsel %vm1281, %v1439, 0
    %1443 = vmatprep.subr.mxu0 0.0
    %1444 = vmatpush1.msra.mxu0 0.0
    %1445 = vmatprep.subr.mxu0 0.0
    %1446 = vmatpush1.msra.mxu0 0.0
    %1447 = vmatprep.subr.mxu0 0.0
    %1448 = vmatpush1.msra.mxu0 0.0
    %1449 = vmatprep.subr.mxu0 0.0
    %1450 = vmatpush1.msra.mxu0 0.0
    %1451 = vmatprep.subr.mxu0 0.0
    %1452 = vmatpush1.msra.mxu0 0.0
    %1453 = vmatprep.subr.mxu0 0.0
    %1454 = vmatpush1.msra.mxu0 0.0
    %1455 = vmatprep.subr.mxu0 0.0
    %1456 = vmatpush1.msra.mxu0 0.0
    %1457 = vmatprep.subr.mxu0 0.0
    %1458 = vmatpush1.msra.mxu0 0.0
    %1459 = vmatprep.subr.mxu0 0.0
    %1460 = vmatpush1.msra.mxu0 %v1056
    %1461 = vmatprep.subr.mxu0 0.0
    %1462 = vmatpush1.msra.mxu0 %v1051
    %1463 = vmatprep.subr.mxu0 0.0
    %1464 = vmatpush1.msra.mxu0 %v1046
    %1465 = vmatprep.subr.mxu0 0.0
    %1466 = vmatpush1.msra.mxu0 %v1041
    %1467 = vmatprep.subr.mxu0 0.0
    %1468 = vmatpush1.msra.mxu0 %v1036
    %1469 = vmatprep.subr.mxu0 0.0
    %1470 = vmatpush1.msra.mxu0 %v1031
    %1471 = vmatprep.subr.mxu0 0.0
    %1472 = vmatpush1.msra.mxu0 %v1026
    %1473 = vmatprep.subr.mxu0 0.0
    %1474 = vmatpush1.msra.mxu0 %v1021
    %1475 = vmatprep.subr.mxu0 0.0
    %1476 = vmatpush2.msra.mxu0 0.0
    %1477 = vmatprep.subr.mxu0 0.0
    %1478 = vmatpush2.msra.mxu0 0.0
    %1479 = vmatprep.subr.mxu0 0.0
    %1480 = vmatpush2.msra.mxu0 0.0
    %1481 = vmatprep.subr.mxu0 0.0
    %1482 = vmatpush2.msra.mxu0 0.0
    %1483 = vmatprep.subr.mxu0 0.0
    %1484 = vmatpush2.msra.mxu0 0.0
    %1485 = vmatprep.subr.mxu0 0.0
    %1486 = vmatpush2.msra.mxu0 0.0
    %1487 = vmatprep.subr.mxu0 0.0
    %1488 = vmatpush2.msra.mxu0 0.0
    %1489 = vmatprep.subr.mxu0 0.0
    %1490 = vmatpush2.msra.mxu0 0.0
    %1491 = vmatprep.subr.mxu0 0.0
    %1492 = vmatpush2.msra.mxu0 0.0
    %1493 = vmatprep.subr.mxu0 0.0
    %1494 = vmatpush2.msra.mxu0 0.0
    %1495 = vmatprep.subr.mxu0 0.0
    %1496 = vmatpush2.msra.mxu0 0.0
    %1497 = vmatprep.subr.mxu0 0.0
    %1498 = vmatpush2.msra.mxu0 0.0
    %1499 = vmatprep.subr.mxu0 0.0
    %1500 = vmatpush2.msra.mxu0 0.0
    %1501 = vmatprep.subr.mxu0 0.0
    %1502 = vmatpush2.msra.mxu0 0.0
    %1503 = vmatprep.subr.mxu0 0.0
    %1504 = vmatpush2.msra.mxu0 0.0
    %1505 = vmatprep.subr.mxu0 0.0
    %1506 = vmatpush2.msra.mxu0 0.0
    %1507 = vmatprep.mubr.f32.mxu0 0.0
    %1508 = vmatmul.mubr.f32.gmra.mxu0 %v1441
    %v1509 = vpop.f32.mrf.mxu0
    %v1510 = vadd.f32 0.0, %v1509
    %v1511 = vpop.f32.mrf.mxu0
    %1512 = vdwg.mxu0
    %1513 = vst.msk [vmem:[#allocation2] sm:$0xff] %vm251, %v1510
    // Predicated region
    $region18: #{semantic_relation_forward.1} parent=1 // pred_check
      _
    $region19: #{semantic_relation_forward.1} parent=1 // pred_check_branch
      %1515 = sbr.rel (0) target = $region21
    $region20: #{semantic_relation_forward.1} parent=1 // pred_region
      _
    $region21: #{semantic_relation_forward.1} parent=1 // pred_fallthru
      _
    // Predicated region
    $region22: #{semantic_relation_forward.1} parent=1 // pred_check
      _
    $region23: #{semantic_relation_forward.1} parent=1 // pred_check_branch
      %1517 = sbr.rel (0) target = $region25
    $region24: #{semantic_relation_forward.1} parent=1 // pred_region
      %s1519 = ssub.s32 128, 128
      %1520 = vsyncadd [#allocation3], %s1519
      %s1522 = sshll.u32 [#allocation2], 4
      %s1523 = int_to_ptr.vmem [resolvable:$true] %s1522
      %1525 = dma.vmem_to_hbm [thread:$0]  %s1523, 128, %s5, [#allocation3]
    $region25: #{semantic_relation_forward.1} parent=1 // pred_fallthru
      _
    // Predicated region
    $region26: #{semantic_relation_forward.1} parent=1 // pred_check
      _
    $region27: #{semantic_relation_forward.1} parent=1 // pred_check_branch
      %1527 = sbr.rel (0) target = $region29
    $region28: #{semantic_relation_forward.1} parent=1 // pred_region
      _
    $region29: #{semantic_relation_forward.1} parent=1 // pred_fallthru
      _
    // Predicated region
    $region30: #{semantic_relation_forward.1} parent=1 // pred_check
      _
    $region31: #{semantic_relation_forward.1} parent=1 // pred_check_branch
      %1529 = sbr.rel (0) target = $region33
    $region32: #{semantic_relation_forward.1} parent=1 // pred_region
      %1530 = dma.done [#allocation3], 128
    $region33: #{semantic_relation_forward.1} parent=1 // pred_fallthru
      _
    %1531 = vsyncpa [#allocation3], 1

</llo_original>
